<compile_context>
chip_gen: v7x
topology: tpu7x:2x2x1
jax: 0.10.0
libtpu: 0.0.40
codegen_flags: <defaults>
</compile_context>

<pallas_src>
import functools
import math

import jax
import jax.numpy as jnp
from jax import lax
from jax.experimental import pallas as pl
from jax.experimental.pallas import tpu as pltpu


# ----------------------------------------------------------------------------
# Fused attention + output-projection kernel.
# Grid: (B, N // tq).  Refs:
#   x_ref     : (1, N, C)    full sequence for this batch (q rows sliced in-kernel)
#   wq/wk/wv  : (C, inner)   bf16 projection weights (all heads)
#   wo        : (inner, C)   bf16 output projection weight
#   bo        : (1, C)       f32 output projection bias
#   out_ref   : (1, tq, C)
#   probs_ref : (1, H, tq, N)
#   k_all_ref / v_all_ref : (N, inner) bf16 VMEM scratch -- per-batch K/V cache
#   o_all_ref : (tq, inner) bf16 VMEM scratch -- per-head output assembly
# ----------------------------------------------------------------------------
def _fused_attn_kernel(x_ref, wq_ref, wk_ref, wv_ref, wo_ref, bo_ref,
                       out_ref, probs_ref,
                       k_all_ref, v_all_ref, o_all_ref,
                       *, heads, dim_head, scale, q_block):
    qi = pl.program_id(1)
    Dh = dim_head

    # K/V projections computed once per batch.  The q-tile grid axis is
    # "arbitrary" (sequential), so for qi > 0 the scratch cache is valid.
    @pl.when(qi == 0)
    def _():
        xkv = x_ref[0].astype(jnp.bfloat16)                              # (N, C)
        k_all_ref[...] = jnp.dot(
            xkv, wk_ref[...], preferred_element_type=jnp.float32
        ).astype(jnp.bfloat16)
        v_all_ref[...] = jnp.dot(
            xkv, wv_ref[...], preferred_element_type=jnp.float32
        ).astype(jnp.bfloat16)

    # Q projection for this tile only; softmax scale folded into q (tq x inner)
    # rather than multiplying sim (H x tq x N).
    q_start = pl.multiple_of(qi * q_block, q_block)
    xq = x_ref[0, pl.ds(q_start, q_block), :].astype(jnp.bfloat16)       # (tq, C)
    q_all = (jnp.dot(xq, wq_ref[...], preferred_element_type=jnp.float32)
             * scale).astype(jnp.bfloat16)                               # (tq, inner)

    k_all = k_all_ref[...]                                               # (N, inner)
    v_all = v_all_ref[...]                                               # (N, inner)

    # heads is small & static.
    # TODO(synk): for very large N on v7x consider lax.fori_loop here to bound
    # the live ranges of the per-head (tq, N) f32 temporaries.
    for h in range(heads):
        q_h = q_all[:, h * Dh:(h + 1) * Dh]                              # (tq, Dh)
        k_h = k_all[:, h * Dh:(h + 1) * Dh]                              # (N,  Dh)
        v_h = v_all[:, h * Dh:(h + 1) * Dh]                              # (N,  Dh)

        # Contract last dims directly: MXU consumes K in its natural (N, Dh)
        # layout -- no k_h.T, no XLU transpose per head.
        sim = lax.dot_general(q_h, k_h, (((1,), (1,)), ((), ())),
                              preferred_element_type=jnp.float32)        # (tq, N)

        # Numerically-stable softmax in f32.  Exact reciprocal (one per row,
        # negligible cost) so the *logged* probabilities sum to 1.
        m = jnp.max(sim, axis=-1, keepdims=True)
        e = jnp.exp(sim - m)
        p = e * (1.0 / jnp.sum(e, axis=-1, keepdims=True))               # (tq, N)

        # Logged attention probabilities (== self.attn_probs).
        probs_ref[0, h, :, :] = p.astype(probs_ref.dtype)

        o_h = jnp.dot(p.astype(jnp.bfloat16), v_h,
                      preferred_element_type=jnp.float32)                # (tq, Dh)
        o_all_ref[:, h * Dh:(h + 1) * Dh] = o_h.astype(jnp.bfloat16)

    # Fused to_out[0]: ONE full-depth (tq, inner) @ (inner, C) matmul + bias.
    # Dropout(p=0.0) is the identity, so to_out is just the Linear + bias.
    y = jnp.dot(o_all_ref[...], wo_ref[...], preferred_element_type=jnp.float32)
    out_ref[0, :, :] = (y + bo_ref[...].astype(jnp.float32)).astype(out_ref.dtype)


def logged_self_attention(x, params, *, heads, dim_head, q_block=128,
                          probs_dtype=jnp.bfloat16):
    """x: (B, N, C) float32.  Returns (out, attn_probs).

    probs_dtype defaults to bfloat16: the (B,H,N,N) probs writeback is the HBM
    roofline of this kernel; pass jnp.float32 if bit-accurate logging of
    attn_probs is required.
    """
    B, N, C = x.shape
    H, Dh = heads, dim_head
    inner = H * Dh
    scale = dim_head ** (-0.5)

    # Query-dimension tiling keeps the in-kernel sim/probs working set at tq*N.
    if N % q_block == 0:
        tq = min(q_block, N)
    else:
        # TODO(synk): padded + masked last q-tile; for now pick the largest
        # divisor of N that fits in q_block (falls back to N only if none do).
        tq = N
        for cand in range(min(q_block, N), 0, -1):
            if N % cand == 0:
                tq = cand
                break
    n_q = N // tq

    # Pre-cast weights to bf16 once (MXU operands): removes per-step VPU casts,
    # halves weight DMA + resident VMEM.  Bias stays f32.
    wq = params["wq"].astype(jnp.bfloat16)
    wk = params["wk"].astype(jnp.bfloat16)
    wv = params["wv"].astype(jnp.bfloat16)
    wo = params["wo"].astype(jnp.bfloat16)
    bo = params["bo"].reshape(1, C).astype(jnp.float32)

    kernel = functools.partial(_fused_attn_kernel, heads=H, dim_head=Dh,
                               scale=scale, q_block=tq)

    out, probs = pl.pallas_call(
        kernel,
        out_shape=(
            jax.ShapeDtypeStruct((B, N, C), x.dtype),
            jax.ShapeDtypeStruct((B, H, N, N), probs_dtype),
        ),
        grid_spec=pltpu.PrefetchScalarGridSpec(
            num_scalar_prefetch=0,
            grid=(B, n_q),
            in_specs=[
                # Full sequence per batch; block index is constant across the
                # q-tile axis so Pallas DMAs it once per batch.
                pl.BlockSpec((1, N, C), lambda b, qi: (b, 0, 0)),
                # TODO(synk): on v7x consider pipeline_mode=pl.Buffered(1) for
                # the constant-index weight blocks to reclaim double-buffer VMEM.
                pl.BlockSpec((C, inner), lambda b, qi: (0, 0)),          # Wq
                pl.BlockSpec((C, inner), lambda b, qi: (0, 0)),          # Wk
                pl.BlockSpec((C, inner), lambda b, qi: (0, 0)),          # Wv
                pl.BlockSpec((inner, C), lambda b, qi: (0, 0)),          # Wo
                pl.BlockSpec((1, C), lambda b, qi: (0, 0)),              # bo
            ],
            out_specs=(
                pl.BlockSpec((1, tq, C), lambda b, qi: (b, qi, 0)),          # out
                pl.BlockSpec((1, H, tq, N), lambda b, qi: (b, 0, qi, 0)),    # probs
            ),
            scratch_shapes=[
                pltpu.VMEM((N, inner), jnp.bfloat16),    # cached K projection
                pltpu.VMEM((N, inner), jnp.bfloat16),    # cached V projection
                pltpu.VMEM((tq, inner), jnp.bfloat16),   # per-head output assembly
            ],
        ),
        compiler_params=pltpu.CompilerParams(
            # Batch axis parallel (megacore split on v7x); q-tile axis must be
            # arbitrary (sequential) for the per-batch K/V scratch cache.
            dimension_semantics=("parallel", "arbitrary"),
            # 48 MiB: below v7x's 64 MiB physical VMEM, above the 32 MiB default.
            vmem_limit_bytes=48 * 1024 * 1024,
        ),
    )(x, wq, wk, wv, wo, bo)

    return out, probs


def _reference(x, params, *, heads, dim_head):
    """Pure-JAX f32 reference of the PyTorch forward (default path)."""
    B, N, C = x.shape
    H, Dh = heads, dim_head
    scale = dim_head ** (-0.5)
    q = x @ params["wq"]
    k = x @ params["wk"]
    v = x @ params["wv"]

    def to_bh(t):
        return jnp.transpose(t.reshape(B, N, H, Dh), (0, 2, 1, 3)).reshape(B * H, N, Dh)

    q, k, v = map(to_bh, (q, k, v))
    sim = jnp.einsum("bid,bjd->bij", q, k) * scale
    p = jax.nn.softmax(sim, axis=-1)
    out = jnp.einsum("bij,bjd->bid", p, v)
    out = jnp.transpose(out.reshape(B, H, N, Dh), (0, 2, 1, 3)).reshape(B, N, H * Dh)
    return out @ params["wo"] + params["bo"], p.reshape(B, H, N, N)


if __name__ == "__main__":
    # Small but lane-aligned shapes: query_dim=64, heads=2, dim_head=32, N=256
    # (N is a multiple of q_block=128 -> two q-tiles, exercising the per-batch
    # K/V scratch cache; probs writeback is lane-dense).
    B, N, C = 2, 256, 64
    heads, dim_head = 2, 32
    inner = heads * dim_head

    key = jax.random.PRNGKey(0)
    kx, kq, kk, kv, ko, kb = jax.random.split(key, 6)

    x = jax.random.normal(kx, (B, N, C), dtype=jnp.float32)

    # Deterministic synthetic parameters (torch Linear shapes transposed to (in, out)).
    s_in = 1.0 / math.sqrt(C)
    s_inner = 1.0 / math.sqrt(inner)
    params = {
        "wq": jax.random.uniform(kq, (C, inner), jnp.float32, -s_in, s_in),
        "wk": jax.random.uniform(kk, (C, inner), jnp.float32, -s_in, s_in),
        "wv": jax.random.uniform(kv, (C, inner), jnp.float32, -s_in, s_in),
        "wo": jax.random.uniform(ko, (inner, C), jnp.float32, -s_inner, s_inner),
        "bo": jax.random.uniform(kb, (C,), jnp.float32, -s_inner, s_inner),
    }

    out, attn_probs = logged_self_attention(x, params, heads=heads,
                                            dim_head=dim_head, q_block=128)
    out = jax.block_until_ready(out)
    attn_probs = jax.block_until_ready(attn_probs)

    ref_out, ref_probs = _reference(x, params, heads=heads, dim_head=dim_head)

    # Tolerances loosened vs f32 reference: matmul operands (q/k/p/v/weights and
    # the assembled per-head outputs) are bf16 with f32 accumulation, and the
    # logged probabilities are stored in bf16 by default.
    probs_f32 = attn_probs.astype(jnp.float32)
    assert jnp.allclose(out, ref_out, atol=2e-2, rtol=2e-2), \
        f"out mismatch, max abs err {jnp.max(jnp.abs(out - ref_out))}"
    assert jnp.allclose(probs_f32, ref_probs, atol=1e-2, rtol=1e-2), \
        f"probs mismatch, max abs err {jnp.max(jnp.abs(probs_f32 - ref_probs))}"

    print("KERNEL_OK")
</pallas_src>

<mosaic_0001>
module attributes {stable_mosaic.version = 11 : i64} {
  func.func @_fused_attn_kernel(%arg0: i32, %arg1: i32, %arg2: memref<1x256x64xf32, #tpu.memory_space<vmem>>, %arg3: memref<64x64xbf16, #tpu.memory_space<vmem>>, %arg4: memref<64x64xbf16, #tpu.memory_space<vmem>>, %arg5: memref<64x64xbf16, #tpu.memory_space<vmem>>, %arg6: memref<64x64xbf16, #tpu.memory_space<vmem>>, %arg7: memref<1x64xf32, #tpu.memory_space<vmem>>, %arg8: memref<1x128x64xf32, #tpu.memory_space<vmem>>, %arg9: memref<1x2x128x256xbf16, #tpu.memory_space<vmem>>, %arg10: memref<256x64xbf16, #tpu.memory_space<vmem>>, %arg11: memref<256x64xbf16, #tpu.memory_space<vmem>>, %arg12: memref<128x64xbf16, #tpu.memory_space<vmem>>) attributes {dimension_semantics = [#tpu.dimension_semantics<parallel>, #tpu.dimension_semantics<arbitrary>], iteration_bounds = array<i64: 2, 2>, scalar_prefetch = 0 : i64, scratch_operands = 3 : i64, tpu.core_type = #tpu.core_type<tc>, window_params = [{transform_indices = @transform_0, window_bounds = array<i64: 1, 256, 64>}, {pipeline_mode = #tpu.pipeline_mode<synchronous>, transform_indices = @transform_1, window_bounds = array<i64: 64, 64>}, {pipeline_mode = #tpu.pipeline_mode<synchronous>, transform_indices = @transform_2, window_bounds = array<i64: 64, 64>}, {pipeline_mode = #tpu.pipeline_mode<synchronous>, transform_indices = @transform_3, window_bounds = array<i64: 64, 64>}, {pipeline_mode = #tpu.pipeline_mode<synchronous>, transform_indices = @transform_4, window_bounds = array<i64: 64, 64>}, {pipeline_mode = #tpu.pipeline_mode<synchronous>, transform_indices = @transform_5, window_bounds = array<i64: 1, 64>}, {transform_indices = @transform_6, window_bounds = array<i64: 1, 128, 64>}, {transform_indices = @transform_7, window_bounds = array<i64: 1, 2, 128, 256>}]} {
    %c0_i32 = arith.constant 0 : i32
    %0 = arith.cmpi eq, %arg1, %c0_i32 : i32
    %1 = arith.extui %0 : i1 to i32
    %c0_i32_0 = arith.constant 0 : i32
    %2 = arith.cmpi ne, %1, %c0_i32_0 : i32
    scf.if %2 {
      %c0_39 = arith.constant 0 : index
      %c0_40 = arith.constant 0 : index
      %c0_41 = arith.constant 0 : index
      %71 = vector.load %arg2[%c0_39, %c0_40, %c0_41] : memref<1x256x64xf32, #tpu.memory_space<vmem>>, vector<1x256x64xf32>
      %72 = vector.shape_cast %71 : vector<1x256x64xf32> to vector<256x64xf32>
      %73 = arith.truncf %72 : vector<256x64xf32> to vector<256x64xbf16>
      %c0_42 = arith.constant 0 : index
      %c0_43 = arith.constant 0 : index
      %74 = vector.load %arg4[%c0_42, %c0_43] : memref<64x64xbf16, #tpu.memory_space<vmem>>, vector<64x64xbf16>
      %cst_44 = arith.constant dense<0.000000e+00> : vector<256x64xf32>
      %75 = tpu.matmul %73, %74, %cst_44 {dimension_numbers = #tpu.dot_dimension_numbers<[1], [0], [0], [1], [0, 0, 1, 1], [], []>} : vector<256x64xbf16>, vector<64x64xbf16>, vector<256x64xf32> -> vector<256x64xf32>
      %76 = arith.truncf %75 : vector<256x64xf32> to vector<256x64xbf16>
      %c0_45 = arith.constant 0 : index
      %c0_46 = arith.constant 0 : index
      %77 = vector.load %arg10[%c0_45, %c0_46] : memref<256x64xbf16, #tpu.memory_space<vmem>>, vector<256x64xbf16>
      tpu.vector_store %arg10[%c0_45, %c0_46], %76 {strides = array<i32>} : memref<256x64xbf16, #tpu.memory_space<vmem>>, vector<256x64xbf16>,
      %c0_47 = arith.constant 0 : index
      %c0_48 = arith.constant 0 : index
      %78 = vector.load %arg5[%c0_47, %c0_48] : memref<64x64xbf16, #tpu.memory_space<vmem>>, vector<64x64xbf16>
      %cst_49 = arith.constant dense<0.000000e+00> : vector<256x64xf32>
      %79 = tpu.matmul %73, %78, %cst_49 {dimension_numbers = #tpu.dot_dimension_numbers<[1], [0], [0], [1], [0, 0, 1, 1], [], []>} : vector<256x64xbf16>, vector<64x64xbf16>, vector<256x64xf32> -> vector<256x64xf32>
      %80 = arith.truncf %79 : vector<256x64xf32> to vector<256x64xbf16>
      %c0_50 = arith.constant 0 : index
      %c0_51 = arith.constant 0 : index
      %81 = vector.load %arg11[%c0_50, %c0_51] : memref<256x64xbf16, #tpu.memory_space<vmem>>, vector<256x64xbf16>
      tpu.vector_store %arg11[%c0_50, %c0_51], %80 {strides = array<i32>} : memref<256x64xbf16, #tpu.memory_space<vmem>>, vector<256x64xbf16>,
    } else {
    }
    %c128_i32 = arith.constant 128 : i32
    %3 = arith.muli %arg1, %c128_i32 : i32
    %4 = tpu.assume_multiple %3, 128 : i32
    %c0 = arith.constant 0 : index
    %5 = arith.index_cast %4 : i32 to index
    %c0_1 = arith.constant 0 : index
    %6 = vector.load %arg2[%c0, %5, %c0_1] : memref<1x256x64xf32, #tpu.memory_space<vmem>>, vector<1x128x64xf32>
    %7 = vector.shape_cast %6 : vector<1x128x64xf32> to vector<128x64xf32>
    %8 = arith.truncf %7 : vector<128x64xf32> to vector<128x64xbf16>
    %c0_2 = arith.constant 0 : index
    %c0_3 = arith.constant 0 : index
    %9 = vector.load %arg3[%c0_2, %c0_3] : memref<64x64xbf16, #tpu.memory_space<vmem>>, vector<64x64xbf16>
    %cst = arith.constant dense<0.000000e+00> : vector<128x64xf32>
    %10 = tpu.matmul %8, %9, %cst {dimension_numbers = #tpu.dot_dimension_numbers<[1], [0], [0], [1], [0, 0, 1, 1], [], []>} : vector<128x64xbf16>, vector<64x64xbf16>, vector<128x64xf32> -> vector<128x64xf32>
    %cst_4 = arith.constant 0.176776692 : f32
    %11 = vector.broadcast %cst_4 : f32 to vector<128x64xf32>
    %12 = arith.mulf %10, %11 : vector<128x64xf32>
    %13 = arith.truncf %12 : vector<128x64xf32> to vector<128x64xbf16>
    %c0_5 = arith.constant 0 : index
    %c0_6 = arith.constant 0 : index
    %14 = vector.load %arg10[%c0_5, %c0_6] : memref<256x64xbf16, #tpu.memory_space<vmem>>, vector<256x64xbf16>
    %c0_7 = arith.constant 0 : index
    %c0_8 = arith.constant 0 : index
    %15 = vector.load %arg11[%c0_7, %c0_8] : memref<256x64xbf16, #tpu.memory_space<vmem>>, vector<256x64xbf16>
    %16 = vector.extract_strided_slice %13 {offsets = [0, 0], sizes = [128, 32], strides = [1, 1]} : vector<128x64xbf16> to vector<128x32xbf16>
    %17 = vector.extract_strided_slice %14 {offsets = [0, 0], sizes = [256, 32], strides = [1, 1]} : vector<256x64xbf16> to vector<256x32xbf16>
    %18 = vector.extract_strided_slice %15 {offsets = [0, 0], sizes = [256, 32], strides = [1, 1]} : vector<256x64xbf16> to vector<256x32xbf16>
    %cst_9 = arith.constant dense<0.000000e+00> : vector<128x256xf32>
    %19 = tpu.matmul %16, %17, %cst_9 {dimension_numbers = #tpu.dot_dimension_numbers<[1], [1], [0], [0], [0, 0, 1, 0], [], []>} : vector<128x32xbf16>, vector<256x32xbf16>, vector<128x256xf32> -> vector<128x256xf32>
    %cst_10 = arith.constant dense<0xFF800000> : vector<128xf32>
    %20 = vector.multi_reduction <maximumf>, %19, %cst_10 [1] : vector<128x256xf32> to vector<128xf32>
    %21 = vector.shape_cast %20 : vector<128xf32> to vector<128x1xf32>
    %22 = vector.broadcast %21 : vector<128x1xf32> to vector<128x256xf32>
    %23 = arith.subf %19, %22 : vector<128x256xf32>
    %24 = math.exp %23 : vector<128x256xf32>
    %cst_11 = arith.constant dense<0.000000e+00> : vector<128xf32>
    %25 = vector.multi_reduction <add>, %24, %cst_11 [1] : vector<128x256xf32> to vector<128xf32>
    %26 = vector.shape_cast %25 : vector<128xf32> to vector<128x1xf32>
    %cst_12 = arith.constant 1.000000e+00 : f32
    %27 = vector.broadcast %cst_12 : f32 to vector<128x1xf32>
    %28 = arith.divf %27, %26 : vector<128x1xf32>
    %29 = vector.broadcast %28 : vector<128x1xf32> to vector<128x256xf32>
    %30 = arith.mulf %24, %29 : vector<128x256xf32>
    %31 = arith.truncf %30 : vector<128x256xf32> to vector<128x256xbf16>
    %c0_13 = arith.constant 0 : index
    %c0_14 = arith.constant 0 : index
    %c0_15 = arith.constant 0 : index
    %c0_16 = arith.constant 0 : index
    %32 = vector.load %arg9[%c0_13, %c0_14, %c0_15, %c0_16] : memref<1x2x128x256xbf16, #tpu.memory_space<vmem>>, vector<1x1x128x256xbf16>
    %33 = vector.shape_cast %32 : vector<1x1x128x256xbf16> to vector<128x256xbf16>
    %34 = vector.shape_cast %31 : vector<128x256xbf16> to vector<1x1x128x256xbf16>
    tpu.vector_store %arg9[%c0_13, %c0_14, %c0_15, %c0_16], %34 {strides = array<i32>} : memref<1x2x128x256xbf16, #tpu.memory_space<vmem>>, vector<1x1x128x256xbf16>,
    %35 = arith.truncf %30 : vector<128x256xf32> to vector<128x256xbf16>
    %cst_17 = arith.constant dense<0.000000e+00> : vector<128x32xf32>
    %36 = tpu.matmul %35, %18, %cst_17 {dimension_numbers = #tpu.dot_dimension_numbers<[1], [0], [0], [1], [0, 0, 1, 1], [], []>} : vector<128x256xbf16>, vector<256x32xbf16>, vector<128x32xf32> -> vector<128x32xf32>
    %37 = arith.truncf %36 : vector<128x32xf32> to vector<128x32xbf16>
    %c0_18 = arith.constant 0 : index
    %c0_19 = arith.constant 0 : index
    %38 = vector.load %arg12[%c0_18, %c0_19] : memref<128x64xbf16, #tpu.memory_space<vmem>>, vector<128x32xbf16>
    tpu.vector_store %arg12[%c0_18, %c0_19], %37 {strides = array<i32>} : memref<128x64xbf16, #tpu.memory_space<vmem>>, vector<128x32xbf16>,
    %39 = vector.extract_strided_slice %13 {offsets = [0, 32], sizes = [128, 32], strides = [1, 1]} : vector<128x64xbf16> to vector<128x32xbf16>
    %40 = vector.extract_strided_slice %14 {offsets = [0, 32], sizes = [256, 32], strides = [1, 1]} : vector<256x64xbf16> to vector<256x32xbf16>
    %41 = vector.extract_strided_slice %15 {offsets = [0, 32], sizes = [256, 32], strides = [1, 1]} : vector<256x64xbf16> to vector<256x32xbf16>
    %cst_20 = arith.constant dense<0.000000e+00> : vector<128x256xf32>
    %42 = tpu.matmul %39, %40, %cst_20 {dimension_numbers = #tpu.dot_dimension_numbers<[1], [1], [0], [0], [0, 0, 1, 0], [], []>} : vector<128x32xbf16>, vector<256x32xbf16>, vector<128x256xf32> -> vector<128x256xf32>
    %cst_21 = arith.constant dense<0xFF800000> : vector<128xf32>
    %43 = vector.multi_reduction <maximumf>, %42, %cst_21 [1] : vector<128x256xf32> to vector<128xf32>
    %44 = vector.shape_cast %43 : vector<128xf32> to vector<128x1xf32>
    %45 = vector.broadcast %44 : vector<128x1xf32> to vector<128x256xf32>
    %46 = arith.subf %42, %45 : vector<128x256xf32>
    %47 = math.exp %46 : vector<128x256xf32>
    %cst_22 = arith.constant dense<0.000000e+00> : vector<128xf32>
    %48 = vector.multi_reduction <add>, %47, %cst_22 [1] : vector<128x256xf32> to vector<128xf32>
    %49 = vector.shape_cast %48 : vector<128xf32> to vector<128x1xf32>
    %cst_23 = arith.constant 1.000000e+00 : f32
    %50 = vector.broadcast %cst_23 : f32 to vector<128x1xf32>
    %51 = arith.divf %50, %49 : vector<128x1xf32>
    %52 = vector.broadcast %51 : vector<128x1xf32> to vector<128x256xf32>
    %53 = arith.mulf %47, %52 : vector<128x256xf32>
    %54 = arith.truncf %53 : vector<128x256xf32> to vector<128x256xbf16>
    %c0_24 = arith.constant 0 : index
    %c1 = arith.constant 1 : index
    %c0_25 = arith.constant 0 : index
    %c0_26 = arith.constant 0 : index
    %55 = vector.load %arg9[%c0_24, %c1, %c0_25, %c0_26] : memref<1x2x128x256xbf16, #tpu.memory_space<vmem>>, vector<1x1x128x256xbf16>
    %56 = vector.shape_cast %55 : vector<1x1x128x256xbf16> to vector<128x256xbf16>
    %57 = vector.shape_cast %54 : vector<128x256xbf16> to vector<1x1x128x256xbf16>
    tpu.vector_store %arg9[%c0_24, %c1, %c0_25, %c0_26], %57 {strides = array<i32>} : memref<1x2x128x256xbf16, #tpu.memory_space<vmem>>, vector<1x1x128x256xbf16>,
    %58 = arith.truncf %53 : vector<128x256xf32> to vector<128x256xbf16>
    %cst_27 = arith.constant dense<0.000000e+00> : vector<128x32xf32>
    %59 = tpu.matmul %58, %41, %cst_27 {dimension_numbers = #tpu.dot_dimension_numbers<[1], [0], [0], [1], [0, 0, 1, 1], [], []>} : vector<128x256xbf16>, vector<256x32xbf16>, vector<128x32xf32> -> vector<128x32xf32>
    %60 = arith.truncf %59 : vector<128x32xf32> to vector<128x32xbf16>
    %c0_28 = arith.constant 0 : index
    %c32 = arith.constant 32 : index
    %61 = vector.load %arg12[%c0_28, %c32] : memref<128x64xbf16, #tpu.memory_space<vmem>>, vector<128x32xbf16>
    tpu.vector_store %arg12[%c0_28, %c32], %60 {strides = array<i32>} : memref<128x64xbf16, #tpu.memory_space<vmem>>, vector<128x32xbf16>,
    %c0_29 = arith.constant 0 : index
    %c0_30 = arith.constant 0 : index
    %62 = vector.load %arg12[%c0_29, %c0_30] : memref<128x64xbf16, #tpu.memory_space<vmem>>, vector<128x64xbf16>
    %c0_31 = arith.constant 0 : index
    %c0_32 = arith.constant 0 : index
    %63 = vector.load %arg6[%c0_31, %c0_32] : memref<64x64xbf16, #tpu.memory_space<vmem>>, vector<64x64xbf16>
    %cst_33 = arith.constant dense<0.000000e+00> : vector<128x64xf32>
    %64 = tpu.matmul %62, %63, %cst_33 {dimension_numbers = #tpu.dot_dimension_numbers<[1], [0], [0], [1], [0, 0, 1, 1], [], []>} : vector<128x64xbf16>, vector<64x64xbf16>, vector<128x64xf32> -> vector<128x64xf32>
    %c0_34 = arith.constant 0 : index
    %c0_35 = arith.constant 0 : index
    %65 = vector.load %arg7[%c0_34, %c0_35] : memref<1x64xf32, #tpu.memory_space<vmem>>, vector<1x64xf32>
    %66 = vector.broadcast %65 : vector<1x64xf32> to vector<128x64xf32>
    %67 = arith.addf %64, %66 : vector<128x64xf32>
    %c0_36 = arith.constant 0 : index
    %c0_37 = arith.constant 0 : index
    %c0_38 = arith.constant 0 : index
    %68 = vector.load %arg8[%c0_36, %c0_37, %c0_38] : memref<1x128x64xf32, #tpu.memory_space<vmem>>, vector<1x128x64xf32>
    %69 = vector.shape_cast %68 : vector<1x128x64xf32> to vector<128x64xf32>
    %70 = vector.shape_cast %67 : vector<128x64xf32> to vector<1x128x64xf32>
    tpu.vector_store %arg8[%c0_36, %c0_37, %c0_38], %70 {strides = array<i32>} : memref<1x128x64xf32, #tpu.memory_space<vmem>>, vector<1x128x64xf32>,
    return
  }
  func.func @transform_0(%arg0: i32, %arg1: i32) -> (i32, i32, i32) {
    %c0_i32 = arith.constant 0 : i32
    %c0_i32_0 = arith.constant 0 : i32
    %c0_i32_1 = arith.constant 0 : i32
    return %arg0, %c0_i32, %c0_i32_0 : i32, i32, i32
  }
  func.func @transform_1(%arg0: i32, %arg1: i32) -> (i32, i32) {
    %c0_i32 = arith.constant 0 : i32
    %c0_i32_0 = arith.constant 0 : i32
    %c0_i32_1 = arith.constant 0 : i32
    return %c0_i32, %c0_i32_0 : i32, i32
  }
  func.func @transform_2(%arg0: i32, %arg1: i32) -> (i32, i32) {
    %c0_i32 = arith.constant 0 : i32
    %c0_i32_0 = arith.constant 0 : i32
    %c0_i32_1 = arith.constant 0 : i32
    return %c0_i32, %c0_i32_0 : i32, i32
  }
  func.func @transform_3(%arg0: i32, %arg1: i32) -> (i32, i32) {
    %c0_i32 = arith.constant 0 : i32
    %c0_i32_0 = arith.constant 0 : i32
    %c0_i32_1 = arith.constant 0 : i32
    return %c0_i32, %c0_i32_0 : i32, i32
  }
  func.func @transform_4(%arg0: i32, %arg1: i32) -> (i32, i32) {
    %c0_i32 = arith.constant 0 : i32
    %c0_i32_0 = arith.constant 0 : i32
    %c0_i32_1 = arith.constant 0 : i32
    return %c0_i32, %c0_i32_0 : i32, i32
  }
  func.func @transform_5(%arg0: i32, %arg1: i32) -> (i32, i32) {
    %c0_i32 = arith.constant 0 : i32
    %c0_i32_0 = arith.constant 0 : i32
    %c0_i32_1 = arith.constant 0 : i32
    return %c0_i32, %c0_i32_0 : i32, i32
  }
  func.func @transform_6(%arg0: i32, %arg1: i32) -> (i32, i32, i32) {
    %c0_i32 = arith.constant 0 : i32
    %c0_i32_0 = arith.constant 0 : i32
    return %arg0, %arg1, %c0_i32 : i32, i32, i32
  }
  func.func @transform_7(%arg0: i32, %arg1: i32) -> (i32, i32, i32, i32) {
    %c0_i32 = arith.constant 0 : i32
    %c0_i32_0 = arith.constant 0 : i32
    %c0_i32_1 = arith.constant 0 : i32
    return %arg0, %c0_i32, %arg1, %c0_i32_0 : i32, i32, i32, i32
  }
}

</mosaic_0001>

<llo_original>
// kernel: tpu_custom_call.1
$region0: #{tpu_custom_call.1}
  #allocation0 [shape = 'u32[]', space=smem, size = 0x4, offset = 0x4, fixed_abs, tag = 'smem constant byte address 0x4 - core index']
  #allocation1 [shape = 'u32[144,128]{1,0:T(1,128)}', space=vmem, size = 0x12000, scoped, tag = 'internal scratch']
  #allocation2 [shape = 'bf16[256,64]{1,0:T(16,128)(2,1)}', space=vmem, size = 0x10000, scoped, tag = 'scratch operand']
  #allocation3 [shape = 'bf16[256,64]{1,0:T(16,128)(2,1)}', space=vmem, size = 0x10000, scoped, tag = 'scratch operand']
  #allocation4 [shape = 'bf16[128,64]{1,0:T(16,128)(2,1)}', space=vmem, size = 0x8000, scoped, tag = 'scratch operand']
  #allocation7 [shape = 's32[]', space=sflag, size = 0x4, offset = 0, fixed_abs, tag = 'sflag constant byte address 0x0 - dummy sync flag']
  %s0 = inlined_call_operand.vmem [shape: f32[2,256,64], index: 0, kind: input, shape index: {}]
  %s1 = inlined_call_operand.vmem [shape: bf16[64,64], index: 1, kind: input, shape index: {}]
  %s2 = inlined_call_operand.vmem [shape: bf16[64,64], index: 2, kind: input, shape index: {}]
  %s3 = inlined_call_operand.vmem [shape: bf16[64,64], index: 3, kind: input, shape index: {}]
  %s4 = inlined_call_operand.vmem [shape: bf16[64,64], index: 4, kind: input, shape index: {}]
  %s5 = inlined_call_operand.vmem [shape: f32[1,64], index: 5, kind: input, shape index: {}]
  %s6 = inlined_call_operand.vmem [shape: f32[2,256,64], index: 6, kind: output, shape index: {0}]
  %s7 = inlined_call_operand.hbm [shape: bf16[2,2,256,256], index: 7, kind: output, shape index: {1}]
  %8 = xla_tuple %s6, %s7
  %s9 = sld [smem:[#allocation0]]
  $region69: #{tpu_custom_call.1} parent=0
    _
  %s11 = ssub.s32 1, %s9
  %s12 = scalar_select 0, %s11, %s9
  $region1: #{tpu_custom_call.1} parent=0
    #allocation5 [shape = 'u8[262144]{0}', space=vmem, size = 0x40000, scoped, tag = 'output window, operand 1']
    #allocation6 [shape = 's32[2]{0}', space=sflag, size = 0x8, scoped, tag = 'scoped memory for tpu_custom_call.1']
    %13 = vsyncpa [#allocation6], 0
    %s14 = scalar_lea.sflag [#allocation6], 1
    %15 = vsyncpa %s14, 0
    loop: start=0, step=1, limit=6
    $region2: #{tpu_custom_call.1} parent=1 // loop_pre_header
      _
    $region3: #{tpu_custom_call.1} parent=1 // loop_header
      %s17 = sphi 0, %s21
      %p18 = scmp.ge.s32.totalorder %s17, 6
      %s24 = sphi 0, %s36
      %s25 = sphi 0, %s32
      %s26 = sphi 0, %s24
      %s27 = sphi 0, %s25
      %s28 = sphi 0, %s26
      %s29 = sphi 0, %s27
      %s39 = sphi 0, %s41
      %s42 = sphi 0, %s39
      %s43 = sphi 0, %s42
      %s59 = sphi 0, %s43
      %s63 = sphi 0, %s63
      %s65 = sphi 0, %s63
      %s66 = sphi 0, %s65
      %s80 = sphi 0, %s66
      %s84 = sphi 0, %s84
      %s86 = sphi 0, %s84
      %s87 = sphi 0, %s86
      %s101 = sphi 0, %s87
      %s105 = sphi 0, %s105
      %s107 = sphi 0, %s105
      %s108 = sphi 0, %s107
      %s122 = sphi 0, %s108
      %s126 = sphi 0, %s126
      %s128 = sphi 0, %s126
      %s129 = sphi 0, %s128
      %s143 = sphi 0, %s129
      %s147 = sphi 0, %s147
      %s149 = sphi 0, %s147
      %s150 = sphi 0, %s149
      %s164 = sphi 0, %s150
      %s172 = sphi 0, %s174
      %s175 = sphi 0, %s172
      %s176 = sphi 0, %s175
      %s192 = sphi 0, %s176
      %s200 = sphi 0, %s202
      %s203 = sphi 0, %s200
      %s204 = sphi 0, %s203
      %s220 = sphi 0, %s204
    $region4: #{tpu_custom_call.1} parent=1 // loop_header_branch
      %20 = sbr.rel (%p18) target = $region8
    $region5: #{tpu_custom_call.1} parent=1 // loop_body
      %s22 = ssub.s32 %s17, 1
      %s23 = ssub.s32 %s17, 2
      %s30 = sadd.s32 1, %s25
      %p31 = scmp.ge.s32.totalorder %s30, 2
      %s32 = scalar_select %p31, 0, %s30
      %s33 = sadd.s32 1, %s24
      %s34 = scalar_select %p31, %s33, %s24
      %p35 = scmp.ge.s32.totalorder %s34, 2
      %s36 = scalar_select %p35, 0, %s34
      %s37 = ssub.s32 %s24, %s36
      %p38 = scmp.eq.s32.totalorder %s37, 0
      %s40 = sadd.s32 %s39, 1
      %s41 = scalar_select %p38, %s39, %s40
      %p44 = pneg %p38
      %p45 = scmp.eq.s32.totalorder %s17, 3
      %p46 = por %p44, %p45
      %p47 = scmp.ne.s32.totalorder %s39, %s42
      %p48 = scmp.eq.s32.totalorder %s17, 0
      %p49 = por %p47, %p48
      %p50 = scmp.ne.s32.totalorder %s39, %s42
      %p51 = scmp.eq.s32.totalorder %s22, 3
      %p52 = por %p50, %p51
      %p53 = scmp.ne.s32.totalorder %s42, %s43
      %p54 = scmp.eq.s32.totalorder %s22, 0
      %p55 = por %p53, %p54
      %p56 = scmp.ne.s32.totalorder %s42, %s43
      %p57 = scmp.eq.s32.totalorder %s23, 3
      %p58 = por %p56, %p57
      %p60 = scmp.ne.s32.totalorder %s43, %s59
      %p61 = scmp.eq.s32.totalorder %s23, 0
      %p62 = por %p60, %p61
      %s64 = sadd.s32 %s63, 1
      %p67 = scmp.eq.s32.totalorder %s17, 3
      %p68 = scmp.ne.s32.totalorder %s63, %s65
      %p69 = scmp.eq.s32.totalorder %s17, 0
      %p70 = por %p68, %p69
      %p71 = scmp.ne.s32.totalorder %s63, %s65
      %p72 = scmp.eq.s32.totalorder %s22, 3
      %p73 = por %p71, %p72
      %p74 = scmp.ne.s32.totalorder %s65, %s66
      %p75 = scmp.eq.s32.totalorder %s22, 0
      %p76 = por %p74, %p75
      %p77 = scmp.ne.s32.totalorder %s65, %s66
      %p78 = scmp.eq.s32.totalorder %s23, 3
      %p79 = por %p77, %p78
      %p81 = scmp.ne.s32.totalorder %s66, %s80
      %p82 = scmp.eq.s32.totalorder %s23, 0
      %p83 = por %p81, %p82
      %s85 = sadd.s32 %s84, 1
      %p88 = scmp.eq.s32.totalorder %s17, 3
      %p89 = scmp.ne.s32.totalorder %s84, %s86
      %p90 = scmp.eq.s32.totalorder %s17, 0
      %p91 = por %p89, %p90
      %p92 = scmp.ne.s32.totalorder %s84, %s86
      %p93 = scmp.eq.s32.totalorder %s22, 3
      %p94 = por %p92, %p93
      %p95 = scmp.ne.s32.totalorder %s86, %s87
      %p96 = scmp.eq.s32.totalorder %s22, 0
      %p97 = por %p95, %p96
      %p98 = scmp.ne.s32.totalorder %s86, %s87
      %p99 = scmp.eq.s32.totalorder %s23, 3
      %p100 = por %p98, %p99
      %p102 = scmp.ne.s32.totalorder %s87, %s101
      %p103 = scmp.eq.s32.totalorder %s23, 0
      %p104 = por %p102, %p103
      %s106 = sadd.s32 %s105, 1
      %p109 = scmp.eq.s32.totalorder %s17, 3
      %p110 = scmp.ne.s32.totalorder %s105, %s107
      %p111 = scmp.eq.s32.totalorder %s17, 0
      %p112 = por %p110, %p111
      %p113 = scmp.ne.s32.totalorder %s105, %s107
      %p114 = scmp.eq.s32.totalorder %s22, 3
      %p115 = por %p113, %p114
      %p116 = scmp.ne.s32.totalorder %s107, %s108
      %p117 = scmp.eq.s32.totalorder %s22, 0
      %p118 = por %p116, %p117
      %p119 = scmp.ne.s32.totalorder %s107, %s108
      %p120 = scmp.eq.s32.totalorder %s23, 3
      %p121 = por %p119, %p120
      %p123 = scmp.ne.s32.totalorder %s108, %s122
      %p124 = scmp.eq.s32.totalorder %s23, 0
      %p125 = por %p123, %p124
      %s127 = sadd.s32 %s126, 1
      %p130 = scmp.eq.s32.totalorder %s17, 3
      %p131 = scmp.ne.s32.totalorder %s126, %s128
      %p132 = scmp.eq.s32.totalorder %s17, 0
      %p133 = por %p131, %p132
      %p134 = scmp.ne.s32.totalorder %s126, %s128
      %p135 = scmp.eq.s32.totalorder %s22, 3
      %p136 = por %p134, %p135
      %p137 = scmp.ne.s32.totalorder %s128, %s129
      %p138 = scmp.eq.s32.totalorder %s22, 0
      %p139 = por %p137, %p138
      %p140 = scmp.ne.s32.totalorder %s128, %s129
      %p141 = scmp.eq.s32.totalorder %s23, 3
      %p142 = por %p140, %p141
      %p144 = scmp.ne.s32.totalorder %s129, %s143
      %p145 = scmp.eq.s32.totalorder %s23, 0
      %p146 = por %p144, %p145
      %s148 = sadd.s32 %s147, 1
      %p151 = scmp.eq.s32.totalorder %s17, 3
      %p152 = scmp.ne.s32.totalorder %s147, %s149
      %p153 = scmp.eq.s32.totalorder %s17, 0
      %p154 = por %p152, %p153
      %p155 = scmp.ne.s32.totalorder %s147, %s149
      %p156 = scmp.eq.s32.totalorder %s22, 3
      %p157 = por %p155, %p156
      %p158 = scmp.ne.s32.totalorder %s149, %s150
      %p159 = scmp.eq.s32.totalorder %s22, 0
      %p160 = por %p158, %p159
      %p161 = scmp.ne.s32.totalorder %s149, %s150
      %p162 = scmp.eq.s32.totalorder %s23, 3
      %p163 = por %p161, %p162
      %p165 = scmp.ne.s32.totalorder %s150, %s164
      %p166 = scmp.eq.s32.totalorder %s23, 0
      %p167 = por %p165, %p166
      %s168 = ssub.s32 %s24, %s36
      %s169 = ssub.s32 %s25, %s32
      %s170 = sor.u32 %s168, %s169
      %p171 = scmp.eq.s32.totalorder %s170, 0
      %s173 = sadd.s32 %s172, 1
      %s174 = scalar_select %p171, %s172, %s173
      %p177 = pneg %p171
      %p178 = scmp.eq.s32.totalorder %s17, 3
      %p179 = por %p177, %p178
      %p180 = scmp.ne.s32.totalorder %s172, %s175
      %p181 = scmp.eq.s32.totalorder %s17, 0
      %p182 = por %p180, %p181
      %p183 = scmp.ne.s32.totalorder %s172, %s175
      %p184 = scmp.eq.s32.totalorder %s22, 3
      %p185 = por %p183, %p184
      %p186 = scmp.ne.s32.totalorder %s175, %s176
      %p187 = scmp.eq.s32.totalorder %s22, 0
      %p188 = por %p186, %p187
      %p189 = scmp.ne.s32.totalorder %s175, %s176
      %p190 = scmp.eq.s32.totalorder %s23, 3
      %p191 = por %p189, %p190
      %p193 = scmp.ne.s32.totalorder %s176, %s192
      %p194 = scmp.eq.s32.totalorder %s23, 0
      %p195 = por %p193, %p194
      %s196 = ssub.s32 %s24, %s36
      %s197 = ssub.s32 %s25, %s32
      %s198 = sor.u32 %s196, %s197
      %p199 = scmp.eq.s32.totalorder %s198, 0
      %s201 = sadd.s32 %s200, 1
      %s202 = scalar_select %p199, %s200, %s201
      %p205 = pneg %p199
      %p206 = scmp.eq.s32.totalorder %s17, 3
      %p207 = por %p205, %p206
      %p208 = scmp.ne.s32.totalorder %s200, %s203
      %p209 = scmp.eq.s32.totalorder %s17, 0
      %p210 = por %p208, %p209
      %p211 = scmp.ne.s32.totalorder %s200, %s203
      %p212 = scmp.eq.s32.totalorder %s22, 3
      %p213 = por %p211, %p212
      %p214 = scmp.ne.s32.totalorder %s203, %s204
      %p215 = scmp.eq.s32.totalorder %s22, 0
      %p216 = por %p214, %p215
      %p217 = scmp.ne.s32.totalorder %s203, %s204
      %p218 = scmp.eq.s32.totalorder %s23, 3
      %p219 = por %p217, %p218
      %p221 = scmp.ne.s32.totalorder %s204, %s220
      %p222 = scmp.eq.s32.totalorder %s23, 0
      %p223 = por %p221, %p222
      %p224 = scmp.le.s32.totalorder 1, %s17
      %p225 = scmp.lt.s32.totalorder %s17, 5
      %p226 = pnand %p224, %p225
      %p227 = pneg %p226
      // Predicated region
      $region9: #{tpu_custom_call.1} parent=5 // pred_check
        _
      $region10: #{tpu_custom_call.1} parent=5 // pred_check_branch
        %229 = sbr.rel (%p226) target = $region12
      $region11: #{tpu_custom_call.1} parent=5 // pred_region
        %s230 = ssub.s32 %s17, 1
        // Predicated region
        $region13: #{tpu_custom_call.1} parent=11 // pred_check
          %p231 = pneg %p76
        $region14: #{tpu_custom_call.1} parent=11 // pred_check_branch
          %233 = sbr.rel (%p231) target = $region16
        $region15: #{tpu_custom_call.1} parent=11 // pred_region
          _
        $region16: #{tpu_custom_call.1} parent=11 // pred_fallthru
          _
        // Predicated region
        $region17: #{tpu_custom_call.1} parent=11 // pred_check
          %p234 = pneg %p97
        $region18: #{tpu_custom_call.1} parent=11 // pred_check_branch
          %236 = sbr.rel (%p234) target = $region20
        $region19: #{tpu_custom_call.1} parent=11 // pred_region
          _
        $region20: #{tpu_custom_call.1} parent=11 // pred_fallthru
          _
        // Predicated region
        $region21: #{tpu_custom_call.1} parent=11 // pred_check
          %p237 = pneg %p118
        $region22: #{tpu_custom_call.1} parent=11 // pred_check_branch
          %239 = sbr.rel (%p237) target = $region24
        $region23: #{tpu_custom_call.1} parent=11 // pred_region
          _
        $region24: #{tpu_custom_call.1} parent=11 // pred_fallthru
          _
        // Predicated region
        $region25: #{tpu_custom_call.1} parent=11 // pred_check
          %p240 = pneg %p139
        $region26: #{tpu_custom_call.1} parent=11 // pred_check_branch
          %242 = sbr.rel (%p240) target = $region28
        $region27: #{tpu_custom_call.1} parent=11 // pred_region
          _
        $region28: #{tpu_custom_call.1} parent=11 // pred_fallthru
          _
        // Predicated region
        $region29: #{tpu_custom_call.1} parent=11 // pred_check
          %p243 = pneg %p160
        $region30: #{tpu_custom_call.1} parent=11 // pred_check_branch
          %245 = sbr.rel (%p243) target = $region32
        $region31: #{tpu_custom_call.1} parent=11 // pred_region
          _
        $region32: #{tpu_custom_call.1} parent=11 // pred_fallthru
          _
      $region12: #{tpu_custom_call.1} parent=5 // pred_fallthru
        _
      %p246 = scmp.lt.s32.totalorder %s17, 4
      // Predicated region
      $region33: #{tpu_custom_call.1} parent=5 // pred_check
        %p247 = pneg %p246
      $region34: #{tpu_custom_call.1} parent=5 // pred_check_branch
        %249 = sbr.rel (%p247) target = $region36
      $region35: #{tpu_custom_call.1} parent=5 // pred_region
        // Predicated region
        $region37: #{tpu_custom_call.1} parent=35 // pred_check
          %p250 = pneg %p49
        $region38: #{tpu_custom_call.1} parent=35 // pred_check_branch
          %252 = sbr.rel (%p250) target = $region40
        $region39: #{tpu_custom_call.1} parent=35 // pred_region
          %p253 = scmp.lt.s32.totalorder %s24, 1
          %s254 = scalar_select %p253, %s24, 1
          %s255 = smul.addr %s254, 32
          %s256 = smul.addr %s255, 8
          %s257 = scalar_lea.vmem %s0, %s256
        $region40: #{tpu_custom_call.1} parent=35 // pred_fallthru
          _
      $region36: #{tpu_custom_call.1} parent=5 // pred_fallthru
        _
      %p258 = scmp.le.s32.totalorder 1, %s17
      %p259 = scmp.lt.s32.totalorder %s17, 5
      %p260 = pnand %p258, %p259
      %p261 = pneg %p260
      // Predicated region
      $region41: #{tpu_custom_call.1} parent=5 // pred_check
        _
      $region42: #{tpu_custom_call.1} parent=5 // pred_check_branch
        %263 = sbr.rel (%p260) target = $region44
      $region43: #{tpu_custom_call.1} parent=5 // pred_region
        %s264 = ssub.s32 %s17, 1
        %p265 = scmp.lt.s32.totalorder %s26, 1
        %s266 = scalar_select %p265, %s26, 1
        %s267 = smul.addr %s266, 32
        %s268 = smul.addr %s267, 8
        %s269 = scalar_lea.vmem %s0, %s268
        %p270 = pneg %p55
        %p271 = pneg %p52
        %p272 = pneg %p76
        %p273 = pneg %p73
        %p274 = pneg %p97
        %p275 = pneg %p94
        %p276 = pneg %p118
        %p277 = pneg %p115
        %p278 = pneg %p139
        %p279 = pneg %p136
        %p280 = pneg %p160
        %p281 = pneg %p157
        %p282 = pneg %p188
        %p283 = pneg %p185
        %s284 = smul.u32 16, %s27
        %p285 = scmp.lt.s32.totalorder %s26, 1
        %s286 = scalar_select %p285, %s26, 1
        %p287 = scmp.lt.s32.totalorder %s284, 31
        %s288 = scalar_select %p287, %s284, 31
        %s289 = smul.addr %s286, 32
        %s290 = sadd.s32 %s288, %s289
        %s291 = smul.addr %s290, 8
        %s292 = scalar_lea.vmem %s6, %s291
        %p293 = pneg %p216
        %p294 = pneg %p213
        %s295 = sand.u32 %s203, 1
        %s296 = scalar_lea.sflag [#allocation6], %s295
        %s297 = sand.u32 %s203, 1
        %s298 = smul.addr %s297, 256
        %s299 = scalar_lea.vmem [#allocation5], %s298
        %p300 = scmp.lt.s32.totalorder %s26, 1
        %s301 = scalar_select %p300, %s26, 1
        %s302 = smul.addr %s301, 32
        %s303 = smul.addr %s302, 8
        %s304 = scalar_lea.vmem %s0, %s303
        %s305 = smul.u32 16, %s27
        %p306 = scmp.lt.s32.totalorder %s26, 1
        %s307 = scalar_select %p306, %s26, 1
        %p308 = scmp.lt.s32.totalorder %s305, 31
        %s309 = scalar_select %p308, %s305, 31
        %s310 = smul.addr %s307, 32
        %s311 = sadd.s32 %s309, %s310
        %s312 = smul.addr %s311, 8
        %s313 = scalar_lea.vmem %s6, %s312
        %s314 = smul.u32 16, %s27
        %s315 = smul.u32 16, %s27
        %p317 = scmp.eq.s32.totalorder %s27, 0
        // Predicated region
        $region45: #{tpu_custom_call.1} parent=43 // pred_check
          %p318 = pneg %p317
        $region46: #{tpu_custom_call.1} parent=43 // pred_check_branch
          %320 = sbr.rel (%p318) target = $region48
        $region47: #{tpu_custom_call.1} parent=43 // pred_region
          %v321 = vld [vmem:[%s304] sm:$0xff]
          %v322 = vld [vmem:[%s304 + $0x8] sm:$0xff]
          %v323 = vld [vmem:[%s304 + $0x10] sm:$0xff]
          %v324 = vld [vmem:[%s304 + $0x18] sm:$0xff]
          %v325 = vld [vmem:[%s304 + $0x20] sm:$0xff]
          %v326 = vld [vmem:[%s304 + $0x28] sm:$0xff]
          %v327 = vld [vmem:[%s304 + $0x30] sm:$0xff]
          %v328 = vld [vmem:[%s304 + $0x38] sm:$0xff]
          %v329 = vld [vmem:[%s304 + $0x40] sm:$0xff]
          %v330 = vld [vmem:[%s304 + $0x48] sm:$0xff]
          %v331 = vld [vmem:[%s304 + $0x50] sm:$0xff]
          %v332 = vld [vmem:[%s304 + $0x58] sm:$0xff]
          %v333 = vld [vmem:[%s304 + $0x60] sm:$0xff]
          %v334 = vld [vmem:[%s304 + $0x68] sm:$0xff]
          %v335 = vld [vmem:[%s304 + $0x70] sm:$0xff]
          %v336 = vld [vmem:[%s304 + $0x78] sm:$0xff]
          %v337 = vld [vmem:[%s304 + $0x80] sm:$0xff]
          %v338 = vld [vmem:[%s304 + $0x88] sm:$0xff]
          %v339 = vld [vmem:[%s304 + $0x90] sm:$0xff]
          %v340 = vld [vmem:[%s304 + $0x98] sm:$0xff]
          %v341 = vld [vmem:[%s304 + $0xa0] sm:$0xff]
          %v342 = vld [vmem:[%s304 + $0xa8] sm:$0xff]
          %v343 = vld [vmem:[%s304 + $0xb0] sm:$0xff]
          %v344 = vld [vmem:[%s304 + $0xb8] sm:$0xff]
          %v345 = vld [vmem:[%s304 + $0xc0] sm:$0xff]
          %v346 = vld [vmem:[%s304 + $0xc8] sm:$0xff]
          %v347 = vld [vmem:[%s304 + $0xd0] sm:$0xff]
          %v348 = vld [vmem:[%s304 + $0xd8] sm:$0xff]
          %v349 = vld [vmem:[%s304 + $0xe0] sm:$0xff]
          %v350 = vld [vmem:[%s304 + $0xe8] sm:$0xff]
          %v351 = vld [vmem:[%s304 + $0xf0] sm:$0xff]
          %v352 = vld [vmem:[%s304 + $0xf8] sm:$0xff]
          %v353 = vpack.c.bf16 %v322, %v321
          %v354 = vpack.c.bf16 %v324, %v323
          %v355 = vpack.c.bf16 %v326, %v325
          %v356 = vpack.c.bf16 %v328, %v327
          %v357 = vpack.c.bf16 %v330, %v329
          %v358 = vpack.c.bf16 %v332, %v331
          %v359 = vpack.c.bf16 %v334, %v333
          %v360 = vpack.c.bf16 %v336, %v335
          %v361 = vpack.c.bf16 %v338, %v337
          %v362 = vpack.c.bf16 %v340, %v339
          %v363 = vpack.c.bf16 %v342, %v341
          %v364 = vpack.c.bf16 %v344, %v343
          %v365 = vpack.c.bf16 %v346, %v345
          %v366 = vpack.c.bf16 %v348, %v347
          %v367 = vpack.c.bf16 %v350, %v349
          %v368 = vpack.c.bf16 %v352, %v351
          %v369 = vld [vmem:[%s2] sm:$0xf]
          %v370 = vld [vmem:[%s2 + $0x4] sm:$0xf]
          %v371 = vld [vmem:[%s2 + $0x8] sm:$0xf]
          %v372 = vld [vmem:[%s2 + $0xc] sm:$0xf]
          %v373 = vld [vmem:[%s2 + $0x10] sm:$0xf]
          %v374 = vld [vmem:[%s2 + $0x14] sm:$0xf]
          %v375 = vld [vmem:[%s2 + $0x18] sm:$0xf]
          %v376 = vld [vmem:[%s2 + $0x1c] sm:$0xf]
          %v385 = vunpack.c.l.b16 %v369
          %v386 = vunpack.c.l.b16 %v370
          %v387 = vunpack.c.l.b16 %v371
          %v388 = vunpack.c.l.b16 %v372
          %v389 = vunpack.c.l.b16 %v373
          %v390 = vunpack.c.l.b16 %v374
          %v391 = vunpack.c.l.b16 %v375
          %v392 = vunpack.c.l.b16 %v376
          %v393 = vpack.c.b16 %v386, %v385
          %v394 = vpack.c.b16 %v388, %v387
          %v395 = vpack.c.b16 %v390, %v389
          %v396 = vpack.c.b16 %v392, %v391
          %vm401 = vcmask 523264
          %v403 = vsel %vm401, %v353, 0
          %v406 = vsel %vm401, %v354, 0
          %v409 = vsel %vm401, %v355, 0
          %v412 = vsel %vm401, %v356, 0
          %v415 = vsel %vm401, %v357, 0
          %v418 = vsel %vm401, %v358, 0
          %v421 = vsel %vm401, %v359, 0
          %v424 = vsel %vm401, %v360, 0
          %v427 = vsel %vm401, %v361, 0
          %v430 = vsel %vm401, %v362, 0
          %v433 = vsel %vm401, %v363, 0
          %v436 = vsel %vm401, %v364, 0
          %v439 = vsel %vm401, %v365, 0
          %v442 = vsel %vm401, %v366, 0
          %v445 = vsel %vm401, %v367, 0
          %v448 = vsel %vm401, %v368, 0
          %450 = vmatprep.subr.bf16.mxu0 0
          %451 = vmatpush1.bf16.msra.mxu0 %v393
          %452 = vmatprep.subr.bf16.mxu0 0
          %453 = vmatpush1.bf16.msra.mxu0 %v394
          %454 = vmatprep.subr.bf16.mxu0 0
          %455 = vmatpush1.bf16.msra.mxu0 %v395
          %456 = vmatprep.subr.bf16.mxu0 0
          %457 = vmatpush1.bf16.msra.mxu0 %v396
          %458 = vmatprep.subr.bf16.mxu0 0
          %459 = vmatpush1.bf16.msra.mxu0 0
          %460 = vmatprep.subr.bf16.mxu0 0
          %461 = vmatpush1.bf16.msra.mxu0 0
          %462 = vmatprep.subr.bf16.mxu0 0
          %463 = vmatpush1.bf16.msra.mxu0 0
          %464 = vmatprep.subr.bf16.mxu0 0
          %465 = vmatpush1.bf16.msra.mxu0 0
          %466 = vmatprep.subr.bf16.mxu0 0
          %467 = vmatpush1.bf16.msra.mxu0 0
          %468 = vmatprep.subr.bf16.mxu0 0
          %469 = vmatpush1.bf16.msra.mxu0 0
          %470 = vmatprep.subr.bf16.mxu0 0
          %471 = vmatpush1.bf16.msra.mxu0 0
          %472 = vmatprep.subr.bf16.mxu0 0
          %473 = vmatpush1.bf16.msra.mxu0 0
          %474 = vmatprep.subr.bf16.mxu0 0
          %475 = vmatpush1.bf16.msra.mxu0 0
          %476 = vmatprep.subr.bf16.mxu0 0
          %477 = vmatpush1.bf16.msra.mxu0 0
          %478 = vmatprep.subr.bf16.mxu0 0
          %479 = vmatpush1.bf16.msra.mxu0 0
          %480 = vmatprep.subr.bf16.mxu0 0
          %481 = vmatpush1.bf16.msra.mxu0 0
          %482 = vmatprep.mubr.bf16.mxu0 0
          %483 = vmatmul.mubr.bf16.gmra.mrb[0].mxu0 %v403
          %v484 = vpop.f32.mrb[0].mxu0
          %v485 = vadd.f32 0.0, %v484
          %v486 = vpop.f32.mrb[0].mxu0
          %v487 = vpop.f32.mrb[0].mxu0
          %v488 = vadd.f32 0.0, %v487
          %v489 = vpop.f32.mrb[0].mxu0
          %490 = vmatprep.mubr.bf16.mxu0 0
          %491 = vmatmul.mubr.bf16.gmra.mrb[0].mxu0 %v406
          %v492 = vpop.f32.mrb[0].mxu0
          %v493 = vadd.f32 0.0, %v492
          %v494 = vpop.f32.mrb[0].mxu0
          %v495 = vpop.f32.mrb[0].mxu0
          %v496 = vadd.f32 0.0, %v495
          %v497 = vpop.f32.mrb[0].mxu0
          %498 = vmatprep.mubr.bf16.mxu0 0
          %499 = vmatmul.mubr.bf16.gmra.mrb[0].mxu0 %v409
          %v500 = vpop.f32.mrb[0].mxu0
          %v501 = vadd.f32 0.0, %v500
          %v502 = vpop.f32.mrb[0].mxu0
          %v503 = vpop.f32.mrb[0].mxu0
          %v504 = vadd.f32 0.0, %v503
          %v505 = vpop.f32.mrb[0].mxu0
          %506 = vmatprep.mubr.bf16.mxu0 0
          %507 = vmatmul.mubr.bf16.gmra.mrb[0].mxu0 %v412
          %v508 = vpop.f32.mrb[0].mxu0
          %v509 = vadd.f32 0.0, %v508
          %v510 = vpop.f32.mrb[0].mxu0
          %v511 = vpop.f32.mrb[0].mxu0
          %v512 = vadd.f32 0.0, %v511
          %v513 = vpop.f32.mrb[0].mxu0
          %514 = vmatprep.mubr.bf16.mxu0 0
          %515 = vmatmul.mubr.bf16.gmra.mrb[0].mxu0 %v415
          %v516 = vpop.f32.mrb[0].mxu0
          %v517 = vadd.f32 0.0, %v516
          %v518 = vpop.f32.mrb[0].mxu0
          %v519 = vpop.f32.mrb[0].mxu0
          %v520 = vadd.f32 0.0, %v519
          %v521 = vpop.f32.mrb[0].mxu0
          %522 = vmatprep.mubr.bf16.mxu0 0
          %523 = vmatmul.mubr.bf16.gmra.mrb[0].mxu0 %v418
          %v524 = vpop.f32.mrb[0].mxu0
          %v525 = vadd.f32 0.0, %v524
          %v526 = vpop.f32.mrb[0].mxu0
          %v527 = vpop.f32.mrb[0].mxu0
          %v528 = vadd.f32 0.0, %v527
          %v529 = vpop.f32.mrb[0].mxu0
          %530 = vmatprep.mubr.bf16.mxu0 0
          %531 = vmatmul.mubr.bf16.gmra.mrb[0].mxu0 %v421
          %v532 = vpop.f32.mrb[0].mxu0
          %v533 = vadd.f32 0.0, %v532
          %v534 = vpop.f32.mrb[0].mxu0
          %v535 = vpop.f32.mrb[0].mxu0
          %v536 = vadd.f32 0.0, %v535
          %v537 = vpop.f32.mrb[0].mxu0
          %538 = vmatprep.mubr.bf16.mxu0 0
          %539 = vmatmul.mubr.bf16.gmra.mrb[0].mxu0 %v424
          %v540 = vpop.f32.mrb[0].mxu0
          %v541 = vadd.f32 0.0, %v540
          %v542 = vpop.f32.mrb[0].mxu0
          %v543 = vpop.f32.mrb[0].mxu0
          %v544 = vadd.f32 0.0, %v543
          %v545 = vpop.f32.mrb[0].mxu0
          %546 = vmatprep.mubr.bf16.mxu0 0
          %547 = vmatmul.mubr.bf16.gmra.mrb[0].mxu0 %v427
          %v548 = vpop.f32.mrb[0].mxu0
          %v549 = vadd.f32 0.0, %v548
          %v550 = vpop.f32.mrb[0].mxu0
          %v551 = vpop.f32.mrb[0].mxu0
          %v552 = vadd.f32 0.0, %v551
          %v553 = vpop.f32.mrb[0].mxu0
          %554 = vmatprep.mubr.bf16.mxu0 0
          %555 = vmatmul.mubr.bf16.gmra.mrb[0].mxu0 %v430
          %v556 = vpop.f32.mrb[0].mxu0
          %v557 = vadd.f32 0.0, %v556
          %v558 = vpop.f32.mrb[0].mxu0
          %v559 = vpop.f32.mrb[0].mxu0
          %v560 = vadd.f32 0.0, %v559
          %v561 = vpop.f32.mrb[0].mxu0
          %562 = vmatprep.mubr.bf16.mxu0 0
          %563 = vmatmul.mubr.bf16.gmra.mrb[0].mxu0 %v433
          %v564 = vpop.f32.mrb[0].mxu0
          %v565 = vadd.f32 0.0, %v564
          %v566 = vpop.f32.mrb[0].mxu0
          %v567 = vpop.f32.mrb[0].mxu0
          %v568 = vadd.f32 0.0, %v567
          %v569 = vpop.f32.mrb[0].mxu0
          %570 = vmatprep.mubr.bf16.mxu0 0
          %571 = vmatmul.mubr.bf16.gmra.mrb[0].mxu0 %v436
          %v572 = vpop.f32.mrb[0].mxu0
          %v573 = vadd.f32 0.0, %v572
          %v574 = vpop.f32.mrb[0].mxu0
          %v575 = vpop.f32.mrb[0].mxu0
          %v576 = vadd.f32 0.0, %v575
          %v577 = vpop.f32.mrb[0].mxu0
          %578 = vmatprep.mubr.bf16.mxu0 0
          %579 = vmatmul.mubr.bf16.gmra.mrb[0].mxu0 %v439
          %v580 = vpop.f32.mrb[0].mxu0
          %v581 = vadd.f32 0.0, %v580
          %v582 = vpop.f32.mrb[0].mxu0
          %v583 = vpop.f32.mrb[0].mxu0
          %v584 = vadd.f32 0.0, %v583
          %v585 = vpop.f32.mrb[0].mxu0
          %586 = vmatprep.mubr.bf16.mxu0 0
          %587 = vmatmul.mubr.bf16.gmra.mrb[0].mxu0 %v442
          %v588 = vpop.f32.mrb[0].mxu0
          %v589 = vadd.f32 0.0, %v588
          %v590 = vpop.f32.mrb[0].mxu0
          %v591 = vpop.f32.mrb[0].mxu0
          %v592 = vadd.f32 0.0, %v591
          %v593 = vpop.f32.mrb[0].mxu0
          %594 = vmatprep.mubr.bf16.mxu0 0
          %595 = vmatmul.mubr.bf16.gmra.mrb[0].mxu0 %v445
          %v596 = vpop.f32.mrb[0].mxu0
          %v597 = vadd.f32 0.0, %v596
          %v598 = vpop.f32.mrb[0].mxu0
          %v599 = vpop.f32.mrb[0].mxu0
          %v600 = vadd.f32 0.0, %v599
          %v601 = vpop.f32.mrb[0].mxu0
          %602 = vmatprep.mubr.bf16.mxu0 0
          %603 = vmatmul.mubr.bf16.gmra.mrb[0].mxu0 %v448
          %v604 = vpop.f32.mrb[0].mxu0
          %v605 = vadd.f32 0.0, %v604
          %v606 = vpop.f32.mrb[0].mxu0
          %v607 = vpop.f32.mrb[0].mxu0
          %v608 = vadd.f32 0.0, %v607
          %v609 = vpop.f32.mrb[0].mxu0
          %610 = vdwg.mxu0
          %v611 = vpack.c.bf16 %v488, %v485
          %v612 = vpack.c.bf16 %v496, %v493
          %v613 = vpack.c.bf16 %v504, %v501
          %v614 = vpack.c.bf16 %v512, %v509
          %v615 = vpack.c.bf16 %v520, %v517
          %v616 = vpack.c.bf16 %v528, %v525
          %v617 = vpack.c.bf16 %v536, %v533
          %v618 = vpack.c.bf16 %v544, %v541
          %v619 = vpack.c.bf16 %v552, %v549
          %v620 = vpack.c.bf16 %v560, %v557
          %v621 = vpack.c.bf16 %v568, %v565
          %v622 = vpack.c.bf16 %v576, %v573
          %v623 = vpack.c.bf16 %v584, %v581
          %v624 = vpack.c.bf16 %v592, %v589
          %v625 = vpack.c.bf16 %v600, %v597
          %v626 = vpack.c.bf16 %v608, %v605
          %627 = vst.msk [vmem:[#allocation2] sm:$0xff] %vm401, %v611
          %628 = vst.msk [vmem:[#allocation2 + $0x8] sm:$0xff] %vm401, %v612
          %629 = vst.msk [vmem:[#allocation2 + $0x10] sm:$0xff] %vm401, %v613
          %630 = vst.msk [vmem:[#allocation2 + $0x18] sm:$0xff] %vm401, %v614
          %631 = vst.msk [vmem:[#allocation2 + $0x20] sm:$0xff] %vm401, %v615
          %632 = vst.msk [vmem:[#allocation2 + $0x28] sm:$0xff] %vm401, %v616
          %633 = vst.msk [vmem:[#allocation2 + $0x30] sm:$0xff] %vm401, %v617
          %634 = vst.msk [vmem:[#allocation2 + $0x38] sm:$0xff] %vm401, %v618
          %635 = vst.msk [vmem:[#allocation2 + $0x40] sm:$0xff] %vm401, %v619
          %636 = vst.msk [vmem:[#allocation2 + $0x48] sm:$0xff] %vm401, %v620
          %637 = vst.msk [vmem:[#allocation2 + $0x50] sm:$0xff] %vm401, %v621
          %638 = vst.msk [vmem:[#allocation2 + $0x58] sm:$0xff] %vm401, %v622
          %639 = vst.msk [vmem:[#allocation2 + $0x60] sm:$0xff] %vm401, %v623
          %640 = vst.msk [vmem:[#allocation2 + $0x68] sm:$0xff] %vm401, %v624
          %641 = vst.msk [vmem:[#allocation2 + $0x70] sm:$0xff] %vm401, %v625
          %642 = vst.msk [vmem:[#allocation2 + $0x78] sm:$0xff] %vm401, %v626
          %v643 = vld [vmem:[%s3] sm:$0xf]
          %v644 = vld [vmem:[%s3 + $0x4] sm:$0xf]
          %v645 = vld [vmem:[%s3 + $0x8] sm:$0xf]
          %v646 = vld [vmem:[%s3 + $0xc] sm:$0xf]
          %v647 = vld [vmem:[%s3 + $0x10] sm:$0xf]
          %v648 = vld [vmem:[%s3 + $0x14] sm:$0xf]
          %v649 = vld [vmem:[%s3 + $0x18] sm:$0xf]
          %v650 = vld [vmem:[%s3 + $0x1c] sm:$0xf]
          %v659 = vunpack.c.l.b16 %v643
          %v660 = vunpack.c.l.b16 %v644
          %v661 = vunpack.c.l.b16 %v645
          %v662 = vunpack.c.l.b16 %v646
          %v663 = vunpack.c.l.b16 %v647
          %v664 = vunpack.c.l.b16 %v648
          %v665 = vunpack.c.l.b16 %v649
          %v666 = vunpack.c.l.b16 %v650
          %v667 = vpack.c.b16 %v660, %v659
          %v668 = vpack.c.b16 %v662, %v661
          %v669 = vpack.c.b16 %v664, %v663
          %v670 = vpack.c.b16 %v666, %v665
          %675 = vmatprep.subr.bf16.mxu0 0
          %676 = vmatpush1.bf16.msra.mxu0 %v667
          %677 = vmatprep.subr.bf16.mxu0 0
          %678 = vmatpush1.bf16.msra.mxu0 %v668
          %679 = vmatprep.subr.bf16.mxu0 0
          %680 = vmatpush1.bf16.msra.mxu0 %v669
          %681 = vmatprep.subr.bf16.mxu0 0
          %682 = vmatpush1.bf16.msra.mxu0 %v670
          %683 = vmatprep.subr.bf16.mxu0 0
          %684 = vmatpush1.bf16.msra.mxu0 0
          %685 = vmatprep.subr.bf16.mxu0 0
          %686 = vmatpush1.bf16.msra.mxu0 0
          %687 = vmatprep.subr.bf16.mxu0 0
          %688 = vmatpush1.bf16.msra.mxu0 0
          %689 = vmatprep.subr.bf16.mxu0 0
          %690 = vmatpush1.bf16.msra.mxu0 0
          %691 = vmatprep.subr.bf16.mxu0 0
          %692 = vmatpush1.bf16.msra.mxu0 0
          %693 = vmatprep.subr.bf16.mxu0 0
          %694 = vmatpush1.bf16.msra.mxu0 0
          %695 = vmatprep.subr.bf16.mxu0 0
          %696 = vmatpush1.bf16.msra.mxu0 0
          %697 = vmatprep.subr.bf16.mxu0 0
          %698 = vmatpush1.bf16.msra.mxu0 0
          %699 = vmatprep.subr.bf16.mxu0 0
          %700 = vmatpush1.bf16.msra.mxu0 0
          %701 = vmatprep.subr.bf16.mxu0 0
          %702 = vmatpush1.bf16.msra.mxu0 0
          %703 = vmatprep.subr.bf16.mxu0 0
          %704 = vmatpush1.bf16.msra.mxu0 0
          %705 = vmatprep.subr.bf16.mxu0 0
          %706 = vmatpush1.bf16.msra.mxu0 0
          %707 = vmatprep.mubr.bf16.mxu0 0
          %708 = vmatmul.mubr.bf16.gmra.mrb[0].mxu0 %v403
          %v709 = vpop.f32.mrb[0].mxu0
          %v710 = vadd.f32 0.0, %v709
          %v711 = vpop.f32.mrb[0].mxu0
          %v712 = vpop.f32.mrb[0].mxu0
          %v713 = vadd.f32 0.0, %v712
          %v714 = vpop.f32.mrb[0].mxu0
          %715 = vmatprep.mubr.bf16.mxu0 0
          %716 = vmatmul.mubr.bf16.gmra.mrb[0].mxu0 %v406
          %v717 = vpop.f32.mrb[0].mxu0
          %v718 = vadd.f32 0.0, %v717
          %v719 = vpop.f32.mrb[0].mxu0
          %v720 = vpop.f32.mrb[0].mxu0
          %v721 = vadd.f32 0.0, %v720
          %v722 = vpop.f32.mrb[0].mxu0
          %723 = vmatprep.mubr.bf16.mxu0 0
          %724 = vmatmul.mubr.bf16.gmra.mrb[0].mxu0 %v409
          %v725 = vpop.f32.mrb[0].mxu0
          %v726 = vadd.f32 0.0, %v725
          %v727 = vpop.f32.mrb[0].mxu0
          %v728 = vpop.f32.mrb[0].mxu0
          %v729 = vadd.f32 0.0, %v728
          %v730 = vpop.f32.mrb[0].mxu0
          %731 = vmatprep.mubr.bf16.mxu0 0
          %732 = vmatmul.mubr.bf16.gmra.mrb[0].mxu0 %v412
          %v733 = vpop.f32.mrb[0].mxu0
          %v734 = vadd.f32 0.0, %v733
          %v735 = vpop.f32.mrb[0].mxu0
          %v736 = vpop.f32.mrb[0].mxu0
          %v737 = vadd.f32 0.0, %v736
          %v738 = vpop.f32.mrb[0].mxu0
          %739 = vmatprep.mubr.bf16.mxu0 0
          %740 = vmatmul.mubr.bf16.gmra.mrb[0].mxu0 %v415
          %v741 = vpop.f32.mrb[0].mxu0
          %v742 = vadd.f32 0.0, %v741
          %v743 = vpop.f32.mrb[0].mxu0
          %v744 = vpop.f32.mrb[0].mxu0
          %v745 = vadd.f32 0.0, %v744
          %v746 = vpop.f32.mrb[0].mxu0
          %747 = vmatprep.mubr.bf16.mxu0 0
          %748 = vmatmul.mubr.bf16.gmra.mrb[0].mxu0 %v418
          %v749 = vpop.f32.mrb[0].mxu0
          %v750 = vadd.f32 0.0, %v749
          %v751 = vpop.f32.mrb[0].mxu0
          %v752 = vpop.f32.mrb[0].mxu0
          %v753 = vadd.f32 0.0, %v752
          %v754 = vpop.f32.mrb[0].mxu0
          %755 = vmatprep.mubr.bf16.mxu0 0
          %756 = vmatmul.mubr.bf16.gmra.mrb[0].mxu0 %v421
          %v757 = vpop.f32.mrb[0].mxu0
          %v758 = vadd.f32 0.0, %v757
          %v759 = vpop.f32.mrb[0].mxu0
          %v760 = vpop.f32.mrb[0].mxu0
          %v761 = vadd.f32 0.0, %v760
          %v762 = vpop.f32.mrb[0].mxu0
          %763 = vmatprep.mubr.bf16.mxu0 0
          %764 = vmatmul.mubr.bf16.gmra.mrb[0].mxu0 %v424
          %v765 = vpop.f32.mrb[0].mxu0
          %v766 = vadd.f32 0.0, %v765
          %v767 = vpop.f32.mrb[0].mxu0
          %v768 = vpop.f32.mrb[0].mxu0
          %v769 = vadd.f32 0.0, %v768
          %v770 = vpop.f32.mrb[0].mxu0
          %771 = vmatprep.mubr.bf16.mxu0 0
          %772 = vmatmul.mubr.bf16.gmra.mrb[0].mxu0 %v427
          %v773 = vpop.f32.mrb[0].mxu0
          %v774 = vadd.f32 0.0, %v773
          %v775 = vpop.f32.mrb[0].mxu0
          %v776 = vpop.f32.mrb[0].mxu0
          %v777 = vadd.f32 0.0, %v776
          %v778 = vpop.f32.mrb[0].mxu0
          %779 = vmatprep.mubr.bf16.mxu0 0
          %780 = vmatmul.mubr.bf16.gmra.mrb[0].mxu0 %v430
          %v781 = vpop.f32.mrb[0].mxu0
          %v782 = vadd.f32 0.0, %v781
          %v783 = vpop.f32.mrb[0].mxu0
          %v784 = vpop.f32.mrb[0].mxu0
          %v785 = vadd.f32 0.0, %v784
          %v786 = vpop.f32.mrb[0].mxu0
          %787 = vmatprep.mubr.bf16.mxu0 0
          %788 = vmatmul.mubr.bf16.gmra.mrb[0].mxu0 %v433
          %v789 = vpop.f32.mrb[0].mxu0
          %v790 = vadd.f32 0.0, %v789
          %v791 = vpop.f32.mrb[0].mxu0
          %v792 = vpop.f32.mrb[0].mxu0
          %v793 = vadd.f32 0.0, %v792
          %v794 = vpop.f32.mrb[0].mxu0
          %795 = vmatprep.mubr.bf16.mxu0 0
          %796 = vmatmul.mubr.bf16.gmra.mrb[0].mxu0 %v436
          %v797 = vpop.f32.mrb[0].mxu0
          %v798 = vadd.f32 0.0, %v797
          %v799 = vpop.f32.mrb[0].mxu0
          %v800 = vpop.f32.mrb[0].mxu0
          %v801 = vadd.f32 0.0, %v800
          %v802 = vpop.f32.mrb[0].mxu0
          %803 = vmatprep.mubr.bf16.mxu0 0
          %804 = vmatmul.mubr.bf16.gmra.mrb[0].mxu0 %v439
          %v805 = vpop.f32.mrb[0].mxu0
          %v806 = vadd.f32 0.0, %v805
          %v807 = vpop.f32.mrb[0].mxu0
          %v808 = vpop.f32.mrb[0].mxu0
          %v809 = vadd.f32 0.0, %v808
          %v810 = vpop.f32.mrb[0].mxu0
          %811 = vmatprep.mubr.bf16.mxu0 0
          %812 = vmatmul.mubr.bf16.gmra.mrb[0].mxu0 %v442
          %v813 = vpop.f32.mrb[0].mxu0
          %v814 = vadd.f32 0.0, %v813
          %v815 = vpop.f32.mrb[0].mxu0
          %v816 = vpop.f32.mrb[0].mxu0
          %v817 = vadd.f32 0.0, %v816
          %v818 = vpop.f32.mrb[0].mxu0
          %819 = vmatprep.mubr.bf16.mxu0 0
          %820 = vmatmul.mubr.bf16.gmra.mrb[0].mxu0 %v445
          %v821 = vpop.f32.mrb[0].mxu0
          %v822 = vadd.f32 0.0, %v821
          %v823 = vpop.f32.mrb[0].mxu0
          %v824 = vpop.f32.mrb[0].mxu0
          %v825 = vadd.f32 0.0, %v824
          %v826 = vpop.f32.mrb[0].mxu0
          %827 = vmatprep.mubr.bf16.mxu0 0
          %828 = vmatmul.mubr.bf16.gmra.mrb[0].mxu0 %v448
          %v829 = vpop.f32.mrb[0].mxu0
          %v830 = vadd.f32 0.0, %v829
          %v831 = vpop.f32.mrb[0].mxu0
          %v832 = vpop.f32.mrb[0].mxu0
          %v833 = vadd.f32 0.0, %v832
          %v834 = vpop.f32.mrb[0].mxu0
          %835 = vdwg.mxu0
          %v836 = vpack.c.bf16 %v713, %v710
          %v837 = vpack.c.bf16 %v721, %v718
          %v838 = vpack.c.bf16 %v729, %v726
          %v839 = vpack.c.bf16 %v737, %v734
          %v840 = vpack.c.bf16 %v745, %v742
          %v841 = vpack.c.bf16 %v753, %v750
          %v842 = vpack.c.bf16 %v761, %v758
          %v843 = vpack.c.bf16 %v769, %v766
          %v844 = vpack.c.bf16 %v777, %v774
          %v845 = vpack.c.bf16 %v785, %v782
          %v846 = vpack.c.bf16 %v793, %v790
          %v847 = vpack.c.bf16 %v801, %v798
          %v848 = vpack.c.bf16 %v809, %v806
          %v849 = vpack.c.bf16 %v817, %v814
          %v850 = vpack.c.bf16 %v825, %v822
          %v851 = vpack.c.bf16 %v833, %v830
          %852 = vst.msk [vmem:[#allocation3] sm:$0xff] %vm401, %v836
          %853 = vst.msk [vmem:[#allocation3 + $0x8] sm:$0xff] %vm401, %v837
          %854 = vst.msk [vmem:[#allocation3 + $0x10] sm:$0xff] %vm401, %v838
          %855 = vst.msk [vmem:[#allocation3 + $0x18] sm:$0xff] %vm401, %v839
          %856 = vst.msk [vmem:[#allocation3 + $0x20] sm:$0xff] %vm401, %v840
          %857 = vst.msk [vmem:[#allocation3 + $0x28] sm:$0xff] %vm401, %v841
          %858 = vst.msk [vmem:[#allocation3 + $0x30] sm:$0xff] %vm401, %v842
          %859 = vst.msk [vmem:[#allocation3 + $0x38] sm:$0xff] %vm401, %v843
          %860 = vst.msk [vmem:[#allocation3 + $0x40] sm:$0xff] %vm401, %v844
          %861 = vst.msk [vmem:[#allocation3 + $0x48] sm:$0xff] %vm401, %v845
          %862 = vst.msk [vmem:[#allocation3 + $0x50] sm:$0xff] %vm401, %v846
          %863 = vst.msk [vmem:[#allocation3 + $0x58] sm:$0xff] %vm401, %v847
          %864 = vst.msk [vmem:[#allocation3 + $0x60] sm:$0xff] %vm401, %v848
          %865 = vst.msk [vmem:[#allocation3 + $0x68] sm:$0xff] %vm401, %v849
          %866 = vst.msk [vmem:[#allocation3 + $0x70] sm:$0xff] %vm401, %v850
          %867 = vst.msk [vmem:[#allocation3 + $0x78] sm:$0xff] %vm401, %v851
        $region48: #{tpu_custom_call.1} parent=43 // pred_fallthru
          _
        %s868 = smul.u32 %s27, 128
        %s869 = scalar_lea.vmem %s304, %s868
        %v870 = vld [vmem:[%s869] sm:$0xff]
        %v871 = vld [vmem:[%s869 + $0x8] sm:$0xff]
        %v872 = vld [vmem:[%s869 + $0x10] sm:$0xff]
        %v873 = vld [vmem:[%s869 + $0x18] sm:$0xff]
        %v874 = vld [vmem:[%s869 + $0x20] sm:$0xff]
        %v875 = vld [vmem:[%s869 + $0x28] sm:$0xff]
        %v876 = vld [vmem:[%s869 + $0x30] sm:$0xff]
        %v877 = vld [vmem:[%s869 + $0x38] sm:$0xff]
        %v878 = vld [vmem:[%s869 + $0x40] sm:$0xff]
        %v879 = vld [vmem:[%s869 + $0x48] sm:$0xff]
        %v880 = vld [vmem:[%s869 + $0x50] sm:$0xff]
        %v881 = vld [vmem:[%s869 + $0x58] sm:$0xff]
        %v882 = vld [vmem:[%s869 + $0x60] sm:$0xff]
        %v883 = vld [vmem:[%s869 + $0x68] sm:$0xff]
        %v884 = vld [vmem:[%s869 + $0x70] sm:$0xff]
        %v885 = vld [vmem:[%s869 + $0x78] sm:$0xff]
        %v886 = vpack.c.bf16 %v871, %v870
        %v887 = vpack.c.bf16 %v873, %v872
        %v888 = vpack.c.bf16 %v875, %v874
        %v889 = vpack.c.bf16 %v877, %v876
        %v890 = vpack.c.bf16 %v879, %v878
        %v891 = vpack.c.bf16 %v881, %v880
        %v892 = vpack.c.bf16 %v883, %v882
        %v893 = vpack.c.bf16 %v885, %v884
        %v894 = vld [vmem:[%s1] sm:$0xf]
        %v895 = vld [vmem:[%s1 + $0x4] sm:$0xf]
        %v896 = vld [vmem:[%s1 + $0x8] sm:$0xf]
        %v897 = vld [vmem:[%s1 + $0xc] sm:$0xf]
        %v898 = vld [vmem:[%s1 + $0x10] sm:$0xf]
        %v899 = vld [vmem:[%s1 + $0x14] sm:$0xf]
        %v900 = vld [vmem:[%s1 + $0x18] sm:$0xf]
        %v901 = vld [vmem:[%s1 + $0x1c] sm:$0xf]
        %v910 = vunpack.c.l.b16 %v894
        %v911 = vunpack.c.l.b16 %v895
        %v912 = vunpack.c.l.b16 %v896
        %v913 = vunpack.c.l.b16 %v897
        %v914 = vunpack.c.l.b16 %v898
        %v915 = vunpack.c.l.b16 %v899
        %v916 = vunpack.c.l.b16 %v900
        %v917 = vunpack.c.l.b16 %v901
        %v918 = vpack.c.b16 %v911, %v910
        %v919 = vpack.c.b16 %v913, %v912
        %v920 = vpack.c.b16 %v915, %v914
        %v921 = vpack.c.b16 %v917, %v916
        %vm926 = vcmask 523264
        %v928 = vsel %vm926, %v886, 0
        %v931 = vsel %vm926, %v887, 0
        %v934 = vsel %vm926, %v888, 0
        %v937 = vsel %vm926, %v889, 0
        %v940 = vsel %vm926, %v890, 0
        %v943 = vsel %vm926, %v891, 0
        %v946 = vsel %vm926, %v892, 0
        %v949 = vsel %vm926, %v893, 0
        %951 = vmatprep.subr.bf16.mxu0 0
        %952 = vmatpush1.bf16.msra.mxu0 %v918
        %953 = vmatprep.subr.bf16.mxu0 0
        %954 = vmatpush1.bf16.msra.mxu0 %v919
        %955 = vmatprep.subr.bf16.mxu0 0
        %956 = vmatpush1.bf16.msra.mxu0 %v920
        %957 = vmatprep.subr.bf16.mxu0 0
        %958 = vmatpush1.bf16.msra.mxu0 %v921
        %959 = vmatprep.subr.bf16.mxu0 0
        %960 = vmatpush1.bf16.msra.mxu0 0
        %961 = vmatprep.subr.bf16.mxu0 0
        %962 = vmatpush1.bf16.msra.mxu0 0
        %963 = vmatprep.subr.bf16.mxu0 0
        %964 = vmatpush1.bf16.msra.mxu0 0
        %965 = vmatprep.subr.bf16.mxu0 0
        %966 = vmatpush1.bf16.msra.mxu0 0
        %967 = vmatprep.subr.bf16.mxu0 0
        %968 = vmatpush1.bf16.msra.mxu0 0
        %969 = vmatprep.subr.bf16.mxu0 0
        %970 = vmatpush1.bf16.msra.mxu0 0
        %971 = vmatprep.subr.bf16.mxu0 0
        %972 = vmatpush1.bf16.msra.mxu0 0
        %973 = vmatprep.subr.bf16.mxu0 0
        %974 = vmatpush1.bf16.msra.mxu0 0
        %975 = vmatprep.subr.bf16.mxu0 0
        %976 = vmatpush1.bf16.msra.mxu0 0
        %977 = vmatprep.subr.bf16.mxu0 0
        %978 = vmatpush1.bf16.msra.mxu0 0
        %979 = vmatprep.subr.bf16.mxu0 0
        %980 = vmatpush1.bf16.msra.mxu0 0
        %981 = vmatprep.subr.bf16.mxu0 0
        %982 = vmatpush1.bf16.msra.mxu0 0
        %983 = vmatprep.mubr.bf16.mxu0 0
        %984 = vmatmul.mubr.bf16.gmra.mrb[0].mxu0 %v928
        %v985 = vpop.f32.mrb[0].mxu0
        %v986 = vadd.f32 0.0, %v985
        %v987 = vpop.f32.mrb[0].mxu0
        %v988 = vpop.f32.mrb[0].mxu0
        %v989 = vadd.f32 0.0, %v988
        %v990 = vpop.f32.mrb[0].mxu0
        %991 = vmatprep.mubr.bf16.mxu0 0
        %992 = vmatmul.mubr.bf16.gmra.mrb[0].mxu0 %v931
        %v993 = vpop.f32.mrb[0].mxu0
        %v994 = vadd.f32 0.0, %v993
        %v995 = vpop.f32.mrb[0].mxu0
        %v996 = vpop.f32.mrb[0].mxu0
        %v997 = vadd.f32 0.0, %v996
        %v998 = vpop.f32.mrb[0].mxu0
        %999 = vmatprep.mubr.bf16.mxu0 0
        %1000 = vmatmul.mubr.bf16.gmra.mrb[0].mxu0 %v934
        %v1001 = vpop.f32.mrb[0].mxu0
        %v1002 = vadd.f32 0.0, %v1001
        %v1003 = vpop.f32.mrb[0].mxu0
        %v1004 = vpop.f32.mrb[0].mxu0
        %v1005 = vadd.f32 0.0, %v1004
        %v1006 = vpop.f32.mrb[0].mxu0
        %1007 = vmatprep.mubr.bf16.mxu0 0
        %1008 = vmatmul.mubr.bf16.gmra.mrb[0].mxu0 %v937
        %v1009 = vpop.f32.mrb[0].mxu0
        %v1010 = vadd.f32 0.0, %v1009
        %v1011 = vpop.f32.mrb[0].mxu0
        %v1012 = vpop.f32.mrb[0].mxu0
        %v1013 = vadd.f32 0.0, %v1012
        %v1014 = vpop.f32.mrb[0].mxu0
        %1015 = vmatprep.mubr.bf16.mxu0 0
        %1016 = vmatmul.mubr.bf16.gmra.mrb[0].mxu0 %v940
        %v1017 = vpop.f32.mrb[0].mxu0
        %v1018 = vadd.f32 0.0, %v1017
        %v1019 = vpop.f32.mrb[0].mxu0
        %v1020 = vpop.f32.mrb[0].mxu0
        %v1021 = vadd.f32 0.0, %v1020
        %v1022 = vpop.f32.mrb[0].mxu0
        %1023 = vmatprep.mubr.bf16.mxu0 0
        %1024 = vmatmul.mubr.bf16.gmra.mrb[0].mxu0 %v943
        %v1025 = vpop.f32.mrb[0].mxu0
        %v1026 = vadd.f32 0.0, %v1025
        %v1027 = vpop.f32.mrb[0].mxu0
        %v1028 = vpop.f32.mrb[0].mxu0
        %v1029 = vadd.f32 0.0, %v1028
        %v1030 = vpop.f32.mrb[0].mxu0
        %1031 = vmatprep.mubr.bf16.mxu0 0
        %1032 = vmatmul.mubr.bf16.gmra.mrb[0].mxu0 %v946
        %v1033 = vpop.f32.mrb[0].mxu0
        %v1034 = vadd.f32 0.0, %v1033
        %v1035 = vpop.f32.mrb[0].mxu0
        %v1036 = vpop.f32.mrb[0].mxu0
        %v1037 = vadd.f32 0.0, %v1036
        %v1038 = vpop.f32.mrb[0].mxu0
        %1039 = vmatprep.mubr.bf16.mxu0 0
        %1040 = vmatmul.mubr.bf16.gmra.mrb[0].mxu0 %v949
        %v1041 = vpop.f32.mrb[0].mxu0
        %v1042 = vadd.f32 0.0, %v1041
        %v1043 = vpop.f32.mrb[0].mxu0
        %v1044 = vpop.f32.mrb[0].mxu0
        %v1045 = vadd.f32 0.0, %v1044
        %v1046 = vpop.f32.mrb[0].mxu0
        %1047 = vdwg.mxu0
        %v1048 = vmul.f32 %v986, 0.17677669
        %v1049 = vmul.f32 %v989, 0.17677669
        %v1050 = vmul.f32 %v994, 0.17677669
        %v1051 = vmul.f32 %v997, 0.17677669
        %v1052 = vmul.f32 %v1002, 0.17677669
        %v1053 = vmul.f32 %v1005, 0.17677669
        %v1054 = vmul.f32 %v1010, 0.17677669
        %v1055 = vmul.f32 %v1013, 0.17677669
        %v1056 = vmul.f32 %v1018, 0.17677669
        %v1057 = vmul.f32 %v1021, 0.17677669
        %v1058 = vmul.f32 %v1026, 0.17677669
        %v1059 = vmul.f32 %v1029, 0.17677669
        %v1060 = vmul.f32 %v1034, 0.17677669
        %v1061 = vmul.f32 %v1037, 0.17677669
        %v1062 = vmul.f32 %v1042, 0.17677669
        %v1063 = vmul.f32 %v1045, 0.17677669
        %v1064 = vpack.c.bf16 %v1049, %v1048
        %v1065 = vpack.c.bf16 %v1051, %v1050
        %v1066 = vpack.c.bf16 %v1053, %v1052
        %v1067 = vpack.c.bf16 %v1055, %v1054
        %v1068 = vpack.c.bf16 %v1057, %v1056
        %v1069 = vpack.c.bf16 %v1059, %v1058
        %v1070 = vpack.c.bf16 %v1061, %v1060
        %v1071 = vpack.c.bf16 %v1063, %v1062
        %v1072 = vld [vmem:[#allocation2] sm:$0xff]
        %v1073 = vld [vmem:[#allocation2 + $0x8] sm:$0xff]
        %v1074 = vld [vmem:[#allocation2 + $0x10] sm:$0xff]
        %v1075 = vld [vmem:[#allocation2 + $0x18] sm:$0xff]
        %v1076 = vld [vmem:[#allocation2 + $0x20] sm:$0xff]
        %v1077 = vld [vmem:[#allocation2 + $0x28] sm:$0xff]
        %v1078 = vld [vmem:[#allocation2 + $0x30] sm:$0xff]
        %v1079 = vld [vmem:[#allocation2 + $0x38] sm:$0xff]
        %v1080 = vld [vmem:[#allocation2 + $0x40] sm:$0xff]
        %v1081 = vld [vmem:[#allocation2 + $0x48] sm:$0xff]
        %v1082 = vld [vmem:[#allocation2 + $0x50] sm:$0xff]
        %v1083 = vld [vmem:[#allocation2 + $0x58] sm:$0xff]
        %v1084 = vld [vmem:[#allocation2 + $0x60] sm:$0xff]
        %v1085 = vld [vmem:[#allocation2 + $0x68] sm:$0xff]
        %v1086 = vld [vmem:[#allocation2 + $0x70] sm:$0xff]
        %v1087 = vld [vmem:[#allocation2 + $0x78] sm:$0xff]
        %v1088 = vld [vmem:[#allocation3] sm:$0xff]
        %v1089 = vld [vmem:[#allocation3 + $0x8] sm:$0xff]
        %v1090 = vld [vmem:[#allocation3 + $0x10] sm:$0xff]
        %v1091 = vld [vmem:[#allocation3 + $0x18] sm:$0xff]
        %v1092 = vld [vmem:[#allocation3 + $0x20] sm:$0xff]
        %v1093 = vld [vmem:[#allocation3 + $0x28] sm:$0xff]
        %v1094 = vld [vmem:[#allocation3 + $0x30] sm:$0xff]
        %v1095 = vld [vmem:[#allocation3 + $0x38] sm:$0xff]
        %v1096 = vld [vmem:[#allocation3 + $0x40] sm:$0xff]
        %v1097 = vld [vmem:[#allocation3 + $0x48] sm:$0xff]
        %v1098 = vld [vmem:[#allocation3 + $0x50] sm:$0xff]
        %v1099 = vld [vmem:[#allocation3 + $0x58] sm:$0xff]
        %v1100 = vld [vmem:[#allocation3 + $0x60] sm:$0xff]
        %v1101 = vld [vmem:[#allocation3 + $0x68] sm:$0xff]
        %v1102 = vld [vmem:[#allocation3 + $0x70] sm:$0xff]
        %v1103 = vld [vmem:[#allocation3 + $0x78] sm:$0xff]
        %vm1104 = vcmask 261120
        %v1106 = vsel %vm1104, %v1064, 0
        %v1109 = vsel %vm1104, %v1065, 0
        %v1112 = vsel %vm1104, %v1066, 0
        %v1115 = vsel %vm1104, %v1067, 0
        %v1118 = vsel %vm1104, %v1068, 0
        %v1121 = vsel %vm1104, %v1069, 0
        %v1124 = vsel %vm1104, %v1070, 0
        %v1127 = vsel %vm1104, %v1071, 0
        %v1130 = vsel %vm1104, %v1072, 0
        %v1133 = vsel %vm1104, %v1073, 0
        %v1136 = vsel %vm1104, %v1074, 0
        %v1139 = vsel %vm1104, %v1075, 0
        %v1142 = vsel %vm1104, %v1076, 0
        %v1145 = vsel %vm1104, %v1077, 0
        %v1148 = vsel %vm1104, %v1078, 0
        %v1151 = vsel %vm1104, %v1079, 0
        %v1154 = vsel %vm1104, %v1080, 0
        %v1157 = vsel %vm1104, %v1081, 0
        %v1160 = vsel %vm1104, %v1082, 0
        %v1163 = vsel %vm1104, %v1083, 0
        %v1166 = vsel %vm1104, %v1084, 0
        %v1169 = vsel %vm1104, %v1085, 0
        %v1172 = vsel %vm1104, %v1086, 0
        %v1175 = vsel %vm1104, %v1087, 0
        %1177 = vmatprep.subr.bf16.mxu0 0
        %1178 = vmatpush1.bf16.xpose.msra.mxu0 %v1130
        %1179 = vmatprep.subr.bf16.mxu0 0
        %1180 = vmatpush1.bf16.xpose.msra.mxu0 %v1133
        %1181 = vmatprep.subr.bf16.mxu0 0
        %1182 = vmatpush1.bf16.xpose.msra.mxu0 %v1136
        %1183 = vmatprep.subr.bf16.mxu0 0
        %1184 = vmatpush1.bf16.xpose.msra.mxu0 %v1139
        %1185 = vmatprep.subr.bf16.mxu0 0
        %1186 = vmatpush1.bf16.xpose.msra.mxu0 %v1142
        %1187 = vmatprep.subr.bf16.mxu0 0
        %1188 = vmatpush1.bf16.xpose.msra.mxu0 %v1145
        %1189 = vmatprep.subr.bf16.mxu0 0
        %1190 = vmatpush1.bf16.xpose.msra.mxu0 %v1148
        %1191 = vmatprep.subr.bf16.mxu0 0
        %1192 = vmatpush1.bf16.xpose.msra.mxu0 %v1151
        %1193 = vmatprep.subr.bf16.mxu0 0
        %1194 = vmatpush1.bf16.xpose.msra.mxu0 %v1154
        %1195 = vmatprep.subr.bf16.mxu0 0
        %1196 = vmatpush1.bf16.xpose.msra.mxu0 %v1157
        %1197 = vmatprep.subr.bf16.mxu0 0
        %1198 = vmatpush1.bf16.xpose.msra.mxu0 %v1160
        %1199 = vmatprep.subr.bf16.mxu0 0
        %1200 = vmatpush1.bf16.xpose.msra.mxu0 %v1163
        %1201 = vmatprep.subr.bf16.mxu0 0
        %1202 = vmatpush1.bf16.xpose.msra.mxu0 %v1166
        %1203 = vmatprep.subr.bf16.mxu0 0
        %1204 = vmatpush1.bf16.xpose.msra.mxu0 %v1169
        %1205 = vmatprep.subr.bf16.mxu0 0
        %1206 = vmatpush1.bf16.xpose.msra.mxu0 %v1172
        %1207 = vmatprep.subr.bf16.mxu0 0
        %1208 = vmatpush1.bf16.xpose.msra.mxu0 %v1175
        %1209 = vmatprep.mubr.bf16.mxu0 0
        %1210 = vmatmul.mubr.bf16.gmra.mrb[0].mxu0 %v1106
        %v1211 = vpop.f32.mrb[0].mxu0
        %v1212 = vadd.f32 0.0, %v1211
        %v1213 = vpop.f32.mrb[0].mxu0
        %v1214 = vadd.f32 0.0, %v1213
        %v1215 = vpop.f32.mrb[0].mxu0
        %v1216 = vadd.f32 0.0, %v1215
        %v1217 = vpop.f32.mrb[0].mxu0
        %v1218 = vadd.f32 0.0, %v1217
        %1219 = vmatprep.mubr.bf16.mxu0 0
        %1220 = vmatmul.mubr.bf16.gmra.mrb[0].mxu0 %v1109
        %v1221 = vpop.f32.mrb[0].mxu0
        %v1222 = vadd.f32 0.0, %v1221
        %v1223 = vpop.f32.mrb[0].mxu0
        %v1224 = vadd.f32 0.0, %v1223
        %v1225 = vpop.f32.mrb[0].mxu0
        %v1226 = vadd.f32 0.0, %v1225
        %v1227 = vpop.f32.mrb[0].mxu0
        %v1228 = vadd.f32 0.0, %v1227
        %1229 = vmatprep.mubr.bf16.mxu0 0
        %1230 = vmatmul.mubr.bf16.gmra.mrb[0].mxu0 %v1112
        %v1231 = vpop.f32.mrb[0].mxu0
        %v1232 = vadd.f32 0.0, %v1231
        %v1233 = vpop.f32.mrb[0].mxu0
        %v1234 = vadd.f32 0.0, %v1233
        %v1235 = vpop.f32.mrb[0].mxu0
        %v1236 = vadd.f32 0.0, %v1235
        %v1237 = vpop.f32.mrb[0].mxu0
        %v1238 = vadd.f32 0.0, %v1237
        %1239 = vmatprep.mubr.bf16.mxu0 0
        %1240 = vmatmul.mubr.bf16.gmra.mrb[0].mxu0 %v1115
        %v1241 = vpop.f32.mrb[0].mxu0
        %v1242 = vadd.f32 0.0, %v1241
        %v1243 = vpop.f32.mrb[0].mxu0
        %v1244 = vadd.f32 0.0, %v1243
        %v1245 = vpop.f32.mrb[0].mxu0
        %v1246 = vadd.f32 0.0, %v1245
        %v1247 = vpop.f32.mrb[0].mxu0
        %v1248 = vadd.f32 0.0, %v1247
        %1249 = vmatprep.mubr.bf16.mxu0 0
        %1250 = vmatmul.mubr.bf16.gmra.mrb[0].mxu0 %v1118
        %v1251 = vpop.f32.mrb[0].mxu0
        %v1252 = vadd.f32 0.0, %v1251
        %v1253 = vpop.f32.mrb[0].mxu0
        %v1254 = vadd.f32 0.0, %v1253
        %v1255 = vpop.f32.mrb[0].mxu0
        %v1256 = vadd.f32 0.0, %v1255
        %v1257 = vpop.f32.mrb[0].mxu0
        %v1258 = vadd.f32 0.0, %v1257
        %1259 = vmatprep.mubr.bf16.mxu0 0
        %1260 = vmatmul.mubr.bf16.gmra.mrb[0].mxu0 %v1121
        %v1261 = vpop.f32.mrb[0].mxu0
        %v1262 = vadd.f32 0.0, %v1261
        %v1263 = vpop.f32.mrb[0].mxu0
        %v1264 = vadd.f32 0.0, %v1263
        %v1265 = vpop.f32.mrb[0].mxu0
        %v1266 = vadd.f32 0.0, %v1265
        %v1267 = vpop.f32.mrb[0].mxu0
        %v1268 = vadd.f32 0.0, %v1267
        %1269 = vmatprep.mubr.bf16.mxu0 0
        %1270 = vmatmul.mubr.bf16.gmra.mrb[0].mxu0 %v1124
        %v1271 = vpop.f32.mrb[0].mxu0
        %v1272 = vadd.f32 0.0, %v1271
        %v1273 = vpop.f32.mrb[0].mxu0
        %v1274 = vadd.f32 0.0, %v1273
        %v1275 = vpop.f32.mrb[0].mxu0
        %v1276 = vadd.f32 0.0, %v1275
        %v1277 = vpop.f32.mrb[0].mxu0
        %v1278 = vadd.f32 0.0, %v1277
        %1279 = vmatprep.mubr.bf16.mxu0 0
        %1280 = vmatmul.mubr.bf16.gmra.mrb[0].mxu0 %v1127
        %v1281 = vpop.f32.mrb[0].mxu0
        %v1282 = vadd.f32 0.0, %v1281
        %v1283 = vpop.f32.mrb[0].mxu0
        %v1284 = vadd.f32 0.0, %v1283
        %v1285 = vpop.f32.mrb[0].mxu0
        %v1286 = vadd.f32 0.0, %v1285
        %v1287 = vpop.f32.mrb[0].mxu0
        %v1288 = vadd.f32 0.0, %v1287
        %1289 = vdwg.mxu0
        %v1290 = vmax.f32 %v1212, %v1214
        %1291 = vmax.xlane.f32.xlu0 %v1290
        %v1292 = vpop.xlane.xlu0 %1291
        %v1293 = vmax.f32 %v1216, %v1218
        %1294 = vmax.xlane.f32.xlu0 %v1293
        %v1295 = vpop.xlane.xlu0 %1294
        %v1296 = vmax.f32 %v1222, %v1224
        %1297 = vmax.xlane.f32.xlu0 %v1296
        %v1298 = vpop.xlane.xlu0 %1297
        %v1299 = vmax.f32 %v1226, %v1228
        %1300 = vmax.xlane.f32.xlu0 %v1299
        %v1301 = vpop.xlane.xlu0 %1300
        %v1302 = vmax.f32 %v1232, %v1234
        %1303 = vmax.xlane.f32.xlu0 %v1302
        %v1304 = vpop.xlane.xlu0 %1303
        %v1305 = vmax.f32 %v1236, %v1238
        %1306 = vmax.xlane.f32.xlu0 %v1305
        %v1307 = vpop.xlane.xlu0 %1306
        %v1308 = vmax.f32 %v1242, %v1244
        %1309 = vmax.xlane.f32.xlu0 %v1308
        %v1310 = vpop.xlane.xlu0 %1309
        %v1311 = vmax.f32 %v1246, %v1248
        %1312 = vmax.xlane.f32.xlu0 %v1311
        %v1313 = vpop.xlane.xlu0 %1312
        %v1314 = vmax.f32 %v1252, %v1254
        %1315 = vmax.xlane.f32.xlu0 %v1314
        %v1316 = vpop.xlane.xlu0 %1315
        %v1317 = vmax.f32 %v1256, %v1258
        %1318 = vmax.xlane.f32.xlu0 %v1317
        %v1319 = vpop.xlane.xlu0 %1318
        %v1320 = vmax.f32 %v1262, %v1264
        %1321 = vmax.xlane.f32.xlu0 %v1320
        %v1322 = vpop.xlane.xlu0 %1321
        %v1323 = vmax.f32 %v1266, %v1268
        %1324 = vmax.xlane.f32.xlu0 %v1323
        %v1325 = vpop.xlane.xlu0 %1324
        %v1326 = vmax.f32 %v1272, %v1274
        %1327 = vmax.xlane.f32.xlu0 %v1326
        %v1328 = vpop.xlane.xlu0 %1327
        %v1329 = vmax.f32 %v1276, %v1278
        %1330 = vmax.xlane.f32.xlu0 %v1329
        %v1331 = vpop.xlane.xlu0 %1330
        %v1332 = vmax.f32 %v1282, %v1284
        %1333 = vmax.xlane.f32.xlu0 %v1332
        %v1334 = vpop.xlane.xlu0 %1333
        %v1335 = vmax.f32 %v1286, %v1288
        %1336 = vmax.xlane.f32.xlu0 %v1335
        %v1337 = vpop.xlane.xlu0 %1336
        %v1338 = vsub.f32 %v1212, %v1292
        %v1339 = vsub.f32 %v1214, %v1292
        %v1340 = vsub.f32 %v1216, %v1295
        %v1341 = vsub.f32 %v1218, %v1295
        %v1342 = vsub.f32 %v1222, %v1298
        %v1343 = vsub.f32 %v1224, %v1298
        %v1344 = vsub.f32 %v1226, %v1301
        %v1345 = vsub.f32 %v1228, %v1301
        %v1346 = vsub.f32 %v1232, %v1304
        %v1347 = vsub.f32 %v1234, %v1304
        %v1348 = vsub.f32 %v1236, %v1307
        %v1349 = vsub.f32 %v1238, %v1307
        %v1350 = vsub.f32 %v1242, %v1310
        %v1351 = vsub.f32 %v1244, %v1310
        %v1352 = vsub.f32 %v1246, %v1313
        %v1353 = vsub.f32 %v1248, %v1313
        %v1354 = vsub.f32 %v1252, %v1316
        %v1355 = vsub.f32 %v1254, %v1316
        %v1356 = vsub.f32 %v1256, %v1319
        %v1357 = vsub.f32 %v1258, %v1319
        %v1358 = vsub.f32 %v1262, %v1322
        %v1359 = vsub.f32 %v1264, %v1322
        %v1360 = vsub.f32 %v1266, %v1325
        %v1361 = vsub.f32 %v1268, %v1325
        %v1362 = vsub.f32 %v1272, %v1328
        %v1363 = vsub.f32 %v1274, %v1328
        %v1364 = vsub.f32 %v1276, %v1331
        %v1365 = vsub.f32 %v1278, %v1331
        %v1366 = vsub.f32 %v1282, %v1334
        %v1367 = vsub.f32 %v1284, %v1334
        %v1368 = vsub.f32 %v1286, %v1337
        %v1369 = vsub.f32 %v1288, %v1337
        %v1370 = vmul.f32 %v1338, 1.442695
        %v1371 = vpow.pop %v1370
        %v1372 = vmul.f32 %v1339, 1.442695
        %v1373 = vpow.pop %v1372
        %v1374 = vmul.f32 %v1340, 1.442695
        %v1375 = vpow.pop %v1374
        %v1376 = vmul.f32 %v1341, 1.442695
        %v1377 = vpow.pop %v1376
        %v1378 = vmul.f32 %v1342, 1.442695
        %v1379 = vpow.pop %v1378
        %v1380 = vmul.f32 %v1343, 1.442695
        %v1381 = vpow.pop %v1380
        %v1382 = vmul.f32 %v1344, 1.442695
        %v1383 = vpow.pop %v1382
        %v1384 = vmul.f32 %v1345, 1.442695
        %v1385 = vpow.pop %v1384
        %v1386 = vmul.f32 %v1346, 1.442695
        %v1387 = vpow.pop %v1386
        %v1388 = vmul.f32 %v1347, 1.442695
        %v1389 = vpow.pop %v1388
        %v1390 = vmul.f32 %v1348, 1.442695
        %v1391 = vpow.pop %v1390
        %v1392 = vmul.f32 %v1349, 1.442695
        %v1393 = vpow.pop %v1392
        %v1394 = vmul.f32 %v1350, 1.442695
        %v1395 = vpow.pop %v1394
        %v1396 = vmul.f32 %v1351, 1.442695
        %v1397 = vpow.pop %v1396
        %v1398 = vmul.f32 %v1352, 1.442695
        %v1399 = vpow.pop %v1398
        %v1400 = vmul.f32 %v1353, 1.442695
        %v1401 = vpow.pop %v1400
        %v1402 = vmul.f32 %v1354, 1.442695
        %v1403 = vpow.pop %v1402
        %v1404 = vmul.f32 %v1355, 1.442695
        %v1405 = vpow.pop %v1404
        %v1406 = vmul.f32 %v1356, 1.442695
        %v1407 = vpow.pop %v1406
        %v1408 = vmul.f32 %v1357, 1.442695
        %v1409 = vpow.pop %v1408
        %v1410 = vmul.f32 %v1358, 1.442695
        %v1411 = vpow.pop %v1410
        %v1412 = vmul.f32 %v1359, 1.442695
        %v1413 = vpow.pop %v1412
        %v1414 = vmul.f32 %v1360, 1.442695
        %v1415 = vpow.pop %v1414
        %v1416 = vmul.f32 %v1361, 1.442695
        %v1417 = vpow.pop %v1416
        %v1418 = vmul.f32 %v1362, 1.442695
        %v1419 = vpow.pop %v1418
        %v1420 = vmul.f32 %v1363, 1.442695
        %v1421 = vpow.pop %v1420
        %v1422 = vmul.f32 %v1364, 1.442695
        %v1423 = vpow.pop %v1422
        %v1424 = vmul.f32 %v1365, 1.442695
        %v1425 = vpow.pop %v1424
        %v1426 = vmul.f32 %v1366, 1.442695
        %v1427 = vpow.pop %v1426
        %v1428 = vmul.f32 %v1367, 1.442695
        %v1429 = vpow.pop %v1428
        %v1430 = vmul.f32 %v1368, 1.442695
        %v1431 = vpow.pop %v1430
        %v1432 = vmul.f32 %v1369, 1.442695
        %v1433 = vpow.pop %v1432
        %v1434 = vadd.f32 %v1371, %v1373
        %1435 = vadd.xlane.f32.xlu0 %v1434
        %v1436 = vpop.xlane.xlu0 %1435
        %v1437 = vadd.f32 %v1375, %v1377
        %1438 = vadd.xlane.f32.xlu0 %v1437
        %v1439 = vpop.xlane.xlu0 %1438
        %v1440 = vadd.f32 %v1379, %v1381
        %1441 = vadd.xlane.f32.xlu0 %v1440
        %v1442 = vpop.xlane.xlu0 %1441
        %v1443 = vadd.f32 %v1383, %v1385
        %1444 = vadd.xlane.f32.xlu0 %v1443
        %v1445 = vpop.xlane.xlu0 %1444
        %v1446 = vadd.f32 %v1387, %v1389
        %1447 = vadd.xlane.f32.xlu0 %v1446
        %v1448 = vpop.xlane.xlu0 %1447
        %v1449 = vadd.f32 %v1391, %v1393
        %1450 = vadd.xlane.f32.xlu0 %v1449
        %v1451 = vpop.xlane.xlu0 %1450
        %v1452 = vadd.f32 %v1395, %v1397
        %1453 = vadd.xlane.f32.xlu0 %v1452
        %v1454 = vpop.xlane.xlu0 %1453
        %v1455 = vadd.f32 %v1399, %v1401
        %1456 = vadd.xlane.f32.xlu0 %v1455
        %v1457 = vpop.xlane.xlu0 %1456
        %v1458 = vadd.f32 %v1403, %v1405
        %1459 = vadd.xlane.f32.xlu0 %v1458
        %v1460 = vpop.xlane.xlu0 %1459
        %v1461 = vadd.f32 %v1407, %v1409
        %1462 = vadd.xlane.f32.xlu0 %v1461
        %v1463 = vpop.xlane.xlu0 %1462
        %v1464 = vadd.f32 %v1411, %v1413
        %1465 = vadd.xlane.f32.xlu0 %v1464
        %v1466 = vpop.xlane.xlu0 %1465
        %v1467 = vadd.f32 %v1415, %v1417
        %1468 = vadd.xlane.f32.xlu0 %v1467
        %v1469 = vpop.xlane.xlu0 %1468
        %v1470 = vadd.f32 %v1419, %v1421
        %1471 = vadd.xlane.f32.xlu0 %v1470
        %v1472 = vpop.xlane.xlu0 %1471
        %v1473 = vadd.f32 %v1423, %v1425
        %1474 = vadd.xlane.f32.xlu0 %v1473
        %v1475 = vpop.xlane.xlu0 %1474
        %v1476 = vadd.f32 %v1427, %v1429
        %1477 = vadd.xlane.f32.xlu0 %v1476
        %v1478 = vpop.xlane.xlu0 %1477
        %v1479 = vadd.f32 %v1431, %v1433
        %1480 = vadd.xlane.f32.xlu0 %v1479
        %v1481 = vpop.xlane.xlu0 %1480
        %v1482 = vrcp.pop %v1436
        %v1483 = vmul.f32 1.0, %v1482
        %v1484 = vrcp.pop %v1439
        %v1485 = vmul.f32 1.0, %v1484
        %v1486 = vrcp.pop %v1442
        %v1487 = vmul.f32 1.0, %v1486
        %v1488 = vrcp.pop %v1445
        %v1489 = vmul.f32 1.0, %v1488
        %v1490 = vrcp.pop %v1448
        %v1491 = vmul.f32 1.0, %v1490
        %v1492 = vrcp.pop %v1451
        %v1493 = vmul.f32 1.0, %v1492
        %v1494 = vrcp.pop %v1454
        %v1495 = vmul.f32 1.0, %v1494
        %v1496 = vrcp.pop %v1457
        %v1497 = vmul.f32 1.0, %v1496
        %v1498 = vrcp.pop %v1460
        %v1499 = vmul.f32 1.0, %v1498
        %v1500 = vrcp.pop %v1463
        %v1501 = vmul.f32 1.0, %v1500
        %v1502 = vrcp.pop %v1466
        %v1503 = vmul.f32 1.0, %v1502
        %v1504 = vrcp.pop %v1469
        %v1505 = vmul.f32 1.0, %v1504
        %v1506 = vrcp.pop %v1472
        %v1507 = vmul.f32 1.0, %v1506
        %v1508 = vrcp.pop %v1475
        %v1509 = vmul.f32 1.0, %v1508
        %v1510 = vrcp.pop %v1478
        %v1511 = vmul.f32 1.0, %v1510
        %v1512 = vrcp.pop %v1481
        %v1513 = vmul.f32 1.0, %v1512
        %v1514 = vmul.f32 %v1371, %v1483
        %v1515 = vmul.f32 %v1373, %v1483
        %v1516 = vmul.f32 %v1375, %v1485
        %v1517 = vmul.f32 %v1377, %v1485
        %v1518 = vmul.f32 %v1379, %v1487
        %v1519 = vmul.f32 %v1381, %v1487
        %v1520 = vmul.f32 %v1383, %v1489
        %v1521 = vmul.f32 %v1385, %v1489
        %v1522 = vmul.f32 %v1387, %v1491
        %v1523 = vmul.f32 %v1389, %v1491
        %v1524 = vmul.f32 %v1391, %v1493
        %v1525 = vmul.f32 %v1393, %v1493
        %v1526 = vmul.f32 %v1395, %v1495
        %v1527 = vmul.f32 %v1397, %v1495
        %v1528 = vmul.f32 %v1399, %v1497
        %v1529 = vmul.f32 %v1401, %v1497
        %v1530 = vmul.f32 %v1403, %v1499
        %v1531 = vmul.f32 %v1405, %v1499
        %v1532 = vmul.f32 %v1407, %v1501
        %v1533 = vmul.f32 %v1409, %v1501
        %v1534 = vmul.f32 %v1411, %v1503
        %v1535 = vmul.f32 %v1413, %v1503
        %v1536 = vmul.f32 %v1415, %v1505
        %v1537 = vmul.f32 %v1417, %v1505
        %v1538 = vmul.f32 %v1419, %v1507
        %v1539 = vmul.f32 %v1421, %v1507
        %v1540 = vmul.f32 %v1423, %v1509
        %v1541 = vmul.f32 %v1425, %v1509
        %v1542 = vmul.f32 %v1427, %v1511
        %v1543 = vmul.f32 %v1429, %v1511
        %v1544 = vmul.f32 %v1431, %v1513
        %v1545 = vmul.f32 %v1433, %v1513
        %v1546 = vpack.c.bf16 %v1516, %v1514
        %v1547 = vpack.c.bf16 %v1517, %v1515
        %v1548 = vpack.c.bf16 %v1520, %v1518
        %v1549 = vpack.c.bf16 %v1521, %v1519
        %v1550 = vpack.c.bf16 %v1524, %v1522
        %v1551 = vpack.c.bf16 %v1525, %v1523
        %v1552 = vpack.c.bf16 %v1528, %v1526
        %v1553 = vpack.c.bf16 %v1529, %v1527
        %v1554 = vpack.c.bf16 %v1532, %v1530
        %v1555 = vpack.c.bf16 %v1533, %v1531
        %v1556 = vpack.c.bf16 %v1536, %v1534
        %v1557 = vpack.c.bf16 %v1537, %v1535
        %v1558 = vpack.c.bf16 %v1540, %v1538
        %v1559 = vpack.c.bf16 %v1541, %v1539
        %v1560 = vpack.c.bf16 %v1544, %v1542
        %v1561 = vpack.c.bf16 %v1545, %v1543
        %v1578 = vunpack.c.l.b16 %v1546
        %v1579 = vunpack.c.l.b16 %v1547
        %v1580 = vunpack.c.h.b16 %v1546
        %v1581 = vunpack.c.h.b16 %v1547
        %v1582 = vunpack.c.l.b16 %v1548
        %v1583 = vunpack.c.l.b16 %v1549
        %v1584 = vunpack.c.h.b16 %v1548
        %v1585 = vunpack.c.h.b16 %v1549
        %v1586 = vunpack.c.l.b16 %v1550
        %v1587 = vunpack.c.l.b16 %v1551
        %v1588 = vunpack.c.h.b16 %v1550
        %v1589 = vunpack.c.h.b16 %v1551
        %v1590 = vunpack.c.l.b16 %v1552
        %v1591 = vunpack.c.l.b16 %v1553
        %v1592 = vunpack.c.h.b16 %v1552
        %v1593 = vunpack.c.h.b16 %v1553
        %v1594 = vunpack.c.l.b16 %v1554
        %v1595 = vunpack.c.l.b16 %v1555
        %v1596 = vunpack.c.h.b16 %v1554
        %v1597 = vunpack.c.h.b16 %v1555
        %v1598 = vunpack.c.l.b16 %v1556
        %v1599 = vunpack.c.l.b16 %v1557
        %v1600 = vunpack.c.h.b16 %v1556
        %v1601 = vunpack.c.h.b16 %v1557
        %v1602 = vunpack.c.l.b16 %v1558
        %v1603 = vunpack.c.l.b16 %v1559
        %v1604 = vunpack.c.h.b16 %v1558
        %v1605 = vunpack.c.h.b16 %v1559
        %v1606 = vunpack.c.l.b16 %v1560
        %v1607 = vunpack.c.l.b16 %v1561
        %v1608 = vunpack.c.h.b16 %v1560
        %v1609 = vunpack.c.h.b16 %v1561
        %v1610 = vpack.c.b16 %v1579, %v1578
        %v1611 = vpack.c.b16 %v1581, %v1580
        %v1612 = vpack.c.b16 %v1583, %v1582
        %v1613 = vpack.c.b16 %v1585, %v1584
        %v1614 = vpack.c.b16 %v1587, %v1586
        %v1615 = vpack.c.b16 %v1589, %v1588
        %v1616 = vpack.c.b16 %v1591, %v1590
        %v1617 = vpack.c.b16 %v1593, %v1592
        %v1618 = vpack.c.b16 %v1595, %v1594
        %v1619 = vpack.c.b16 %v1597, %v1596
        %v1620 = vpack.c.b16 %v1599, %v1598
        %v1621 = vpack.c.b16 %v1601, %v1600
        %v1622 = vpack.c.b16 %v1603, %v1602
        %v1623 = vpack.c.b16 %v1605, %v1604
        %v1624 = vpack.c.b16 %v1607, %v1606
        %v1625 = vpack.c.b16 %v1609, %v1608
        %1642 = vst [vmem:[%s299] sm:$0xff] %v1610
        %1643 = vst [vmem:[%s299 + $0x8] sm:$0xff] %v1611
        %1644 = vst [vmem:[%s299 + $0x10] sm:$0xff] %v1612
        %1645 = vst [vmem:[%s299 + $0x18] sm:$0xff] %v1613
        %1646 = vst [vmem:[%s299 + $0x20] sm:$0xff] %v1614
        %1647 = vst [vmem:[%s299 + $0x28] sm:$0xff] %v1615
        %1648 = vst [vmem:[%s299 + $0x30] sm:$0xff] %v1616
        %1649 = vst [vmem:[%s299 + $0x38] sm:$0xff] %v1617
        %1650 = vst [vmem:[%s299 + $0x40] sm:$0xff] %v1618
        %1651 = vst [vmem:[%s299 + $0x48] sm:$0xff] %v1619
        %1652 = vst [vmem:[%s299 + $0x50] sm:$0xff] %v1620
        %1653 = vst [vmem:[%s299 + $0x58] sm:$0xff] %v1621
        %1654 = vst [vmem:[%s299 + $0x60] sm:$0xff] %v1622
        %1655 = vst [vmem:[%s299 + $0x68] sm:$0xff] %v1623
        %1656 = vst [vmem:[%s299 + $0x70] sm:$0xff] %v1624
        %1657 = vst [vmem:[%s299 + $0x78] sm:$0xff] %v1625
        %1658 = vmatprep.subr.bf16.mxu0 0
        %1659 = vmatpush1.bf16.msra.mxu0 %v1088
        %1660 = vmatprep.subr.bf16.mxu0 0
        %1661 = vmatpush1.bf16.msra.mxu0 %v1089
        %1662 = vmatprep.subr.bf16.mxu0 0
        %1663 = vmatpush1.bf16.msra.mxu0 %v1090
        %1664 = vmatprep.subr.bf16.mxu0 0
        %1665 = vmatpush1.bf16.msra.mxu0 %v1091
        %1666 = vmatprep.subr.bf16.mxu0 0
        %1667 = vmatpush1.bf16.msra.mxu0 %v1092
        %1668 = vmatprep.subr.bf16.mxu0 0
        %1669 = vmatpush1.bf16.msra.mxu0 %v1093
        %1670 = vmatprep.subr.bf16.mxu0 0
        %1671 = vmatpush1.bf16.msra.mxu0 %v1094
        %1672 = vmatprep.subr.bf16.mxu0 0
        %1673 = vmatpush1.bf16.msra.mxu0 %v1095
        %1674 = vmatprep.subr.bf16.mxu0 0
        %1675 = vmatpush1.bf16.msra.mxu0 %v1096
        %1676 = vmatprep.subr.bf16.mxu0 0
        %1677 = vmatpush1.bf16.msra.mxu0 %v1097
        %1678 = vmatprep.subr.bf16.mxu0 0
        %1679 = vmatpush1.bf16.msra.mxu0 %v1098
        %1680 = vmatprep.subr.bf16.mxu0 0
        %1681 = vmatpush1.bf16.msra.mxu0 %v1099
        %1682 = vmatprep.subr.bf16.mxu0 0
        %1683 = vmatpush1.bf16.msra.mxu0 %v1100
        %1684 = vmatprep.subr.bf16.mxu0 0
        %1685 = vmatpush1.bf16.msra.mxu0 %v1101
        %1686 = vmatprep.subr.bf16.mxu0 0
        %1687 = vmatpush1.bf16.msra.mxu0 %v1102
        %1688 = vmatprep.subr.bf16.mxu0 0
        %1689 = vmatpush1.bf16.msra.mxu0 %v1103
        %1690 = vmatprep.mubr.bf16.mxu0 %v1547
        %1691 = vmatmul.mubr.bf16.gmra.mrb[0].mxu0 %v1546
        %v1692 = vpop.f32.mrb[0].mxu0
        %v1693 = vadd.f32 0.0, %v1692
        %v1694 = vpop.f32.mrb[0].mxu0
        %v1695 = vpop.f32.mrb[0].mxu0
        %v1696 = vadd.f32 0.0, %v1695
        %v1697 = vpop.f32.mrb[0].mxu0
        %1698 = vmatprep.mubr.bf16.mxu0 %v1549
        %1699 = vmatmul.mubr.bf16.gmra.mrb[0].mxu0 %v1548
        %v1700 = vpop.f32.mrb[0].mxu0
        %v1701 = vadd.f32 0.0, %v1700
        %v1702 = vpop.f32.mrb[0].mxu0
        %v1703 = vpop.f32.mrb[0].mxu0
        %v1704 = vadd.f32 0.0, %v1703
        %v1705 = vpop.f32.mrb[0].mxu0
        %1706 = vmatprep.mubr.bf16.mxu0 %v1551
        %1707 = vmatmul.mubr.bf16.gmra.mrb[0].mxu0 %v1550
        %v1708 = vpop.f32.mrb[0].mxu0
        %v1709 = vadd.f32 0.0, %v1708
        %v1710 = vpop.f32.mrb[0].mxu0
        %v1711 = vpop.f32.mrb[0].mxu0
        %v1712 = vadd.f32 0.0, %v1711
        %v1713 = vpop.f32.mrb[0].mxu0
        %1714 = vmatprep.mubr.bf16.mxu0 %v1553
        %1715 = vmatmul.mubr.bf16.gmra.mrb[0].mxu0 %v1552
        %v1716 = vpop.f32.mrb[0].mxu0
        %v1717 = vadd.f32 0.0, %v1716
        %v1718 = vpop.f32.mrb[0].mxu0
        %v1719 = vpop.f32.mrb[0].mxu0
        %v1720 = vadd.f32 0.0, %v1719
        %v1721 = vpop.f32.mrb[0].mxu0
        %1722 = vmatprep.mubr.bf16.mxu0 %v1555
        %1723 = vmatmul.mubr.bf16.gmra.mrb[0].mxu0 %v1554
        %v1724 = vpop.f32.mrb[0].mxu0
        %v1725 = vadd.f32 0.0, %v1724
        %v1726 = vpop.f32.mrb[0].mxu0
        %v1727 = vpop.f32.mrb[0].mxu0
        %v1728 = vadd.f32 0.0, %v1727
        %v1729 = vpop.f32.mrb[0].mxu0
        %1730 = vmatprep.mubr.bf16.mxu0 %v1557
        %1731 = vmatmul.mubr.bf16.gmra.mrb[0].mxu0 %v1556
        %v1732 = vpop.f32.mrb[0].mxu0
        %v1733 = vadd.f32 0.0, %v1732
        %v1734 = vpop.f32.mrb[0].mxu0
        %v1735 = vpop.f32.mrb[0].mxu0
        %v1736 = vadd.f32 0.0, %v1735
        %v1737 = vpop.f32.mrb[0].mxu0
        %1738 = vmatprep.mubr.bf16.mxu0 %v1559
        %1739 = vmatmul.mubr.bf16.gmra.mrb[0].mxu0 %v1558
        %v1740 = vpop.f32.mrb[0].mxu0
        %v1741 = vadd.f32 0.0, %v1740
        %v1742 = vpop.f32.mrb[0].mxu0
        %v1743 = vpop.f32.mrb[0].mxu0
        %v1744 = vadd.f32 0.0, %v1743
        %v1745 = vpop.f32.mrb[0].mxu0
        %1746 = vmatprep.mubr.bf16.mxu0 %v1561
        %1747 = vmatmul.mubr.bf16.gmra.mrb[0].mxu0 %v1560
        %v1748 = vpop.f32.mrb[0].mxu0
        %v1749 = vadd.f32 0.0, %v1748
        %v1750 = vpop.f32.mrb[0].mxu0
        %v1751 = vpop.f32.mrb[0].mxu0
        %v1752 = vadd.f32 0.0, %v1751
        %v1753 = vpop.f32.mrb[0].mxu0
        %1754 = vdwg.mxu0
        %v1755 = vpack.c.bf16 %v1696, %v1693
        %v1756 = vpack.c.bf16 %v1704, %v1701
        %v1757 = vpack.c.bf16 %v1712, %v1709
        %v1758 = vpack.c.bf16 %v1720, %v1717
        %v1759 = vpack.c.bf16 %v1728, %v1725
        %v1760 = vpack.c.bf16 %v1736, %v1733
        %v1761 = vpack.c.bf16 %v1744, %v1741
        %v1762 = vpack.c.bf16 %v1752, %v1749
        %1763 = vst.msk [vmem:[#allocation4] sm:$0xff] %vm1104, %v1755
        %1764 = vst.msk [vmem:[#allocation4 + $0x8] sm:$0xff] %vm1104, %v1756
        %1765 = vst.msk [vmem:[#allocation4 + $0x10] sm:$0xff] %vm1104, %v1757
        %1766 = vst.msk [vmem:[#allocation4 + $0x18] sm:$0xff] %vm1104, %v1758
        %1767 = vst.msk [vmem:[#allocation4 + $0x20] sm:$0xff] %vm1104, %v1759
        %1768 = vst.msk [vmem:[#allocation4 + $0x28] sm:$0xff] %vm1104, %v1760
        %1769 = vst.msk [vmem:[#allocation4 + $0x30] sm:$0xff] %vm1104, %v1761
        %1770 = vst.msk [vmem:[#allocation4 + $0x38] sm:$0xff] %vm1104, %v1762
        %1779 = vrot.lane.b32.xlu0 %v1064, 96
        %v1780 = vpop.permute.xlu0 %1779
        %1781 = vrot.lane.b32.xlu0 %v1065, 96
        %v1782 = vpop.permute.xlu0 %1781
        %1783 = vrot.lane.b32.xlu0 %v1066, 96
        %v1784 = vpop.permute.xlu0 %1783
        %1785 = vrot.lane.b32.xlu0 %v1067, 96
        %v1786 = vpop.permute.xlu0 %1785
        %1787 = vrot.lane.b32.xlu0 %v1068, 96
        %v1788 = vpop.permute.xlu0 %1787
        %1789 = vrot.lane.b32.xlu0 %v1069, 96
        %v1790 = vpop.permute.xlu0 %1789
        %1791 = vrot.lane.b32.xlu0 %v1070, 96
        %v1792 = vpop.permute.xlu0 %1791
        %1793 = vrot.lane.b32.xlu0 %v1071, 96
        %v1794 = vpop.permute.xlu0 %1793
        %1811 = vrot.lane.b32.xlu0 %v1072, 96
        %v1812 = vpop.permute.xlu0 %1811
        %1813 = vrot.lane.b32.xlu0 %v1073, 96
        %v1814 = vpop.permute.xlu0 %1813
        %1815 = vrot.lane.b32.xlu0 %v1074, 96
        %v1816 = vpop.permute.xlu0 %1815
        %1817 = vrot.lane.b32.xlu0 %v1075, 96
        %v1818 = vpop.permute.xlu0 %1817
        %1819 = vrot.lane.b32.xlu0 %v1076, 96
        %v1820 = vpop.permute.xlu0 %1819
        %1821 = vrot.lane.b32.xlu0 %v1077, 96
        %v1822 = vpop.permute.xlu0 %1821
        %1823 = vrot.lane.b32.xlu0 %v1078, 96
        %v1824 = vpop.permute.xlu0 %1823
        %1825 = vrot.lane.b32.xlu0 %v1079, 96
        %v1826 = vpop.permute.xlu0 %1825
        %1827 = vrot.lane.b32.xlu0 %v1080, 96
        %v1828 = vpop.permute.xlu0 %1827
        %1829 = vrot.lane.b32.xlu0 %v1081, 96
        %v1830 = vpop.permute.xlu0 %1829
        %1831 = vrot.lane.b32.xlu0 %v1082, 96
        %v1832 = vpop.permute.xlu0 %1831
        %1833 = vrot.lane.b32.xlu0 %v1083, 96
        %v1834 = vpop.permute.xlu0 %1833
        %1835 = vrot.lane.b32.xlu0 %v1084, 96
        %v1836 = vpop.permute.xlu0 %1835
        %1837 = vrot.lane.b32.xlu0 %v1085, 96
        %v1838 = vpop.permute.xlu0 %1837
        %1839 = vrot.lane.b32.xlu0 %v1086, 96
        %v1840 = vpop.permute.xlu0 %1839
        %1841 = vrot.lane.b32.xlu0 %v1087, 96
        %v1842 = vpop.permute.xlu0 %1841
        %v1844 = vsel %vm1104, %v1780, 0
        %v1847 = vsel %vm1104, %v1782, 0
        %v1850 = vsel %vm1104, %v1784, 0
        %v1853 = vsel %vm1104, %v1786, 0
        %v1856 = vsel %vm1104, %v1788, 0
        %v1859 = vsel %vm1104, %v1790, 0
        %v1862 = vsel %vm1104, %v1792, 0
        %v1865 = vsel %vm1104, %v1794, 0
        %v1868 = vsel %vm1104, %v1812, 0
        %v1871 = vsel %vm1104, %v1814, 0
        %v1874 = vsel %vm1104, %v1816, 0
        %v1877 = vsel %vm1104, %v1818, 0
        %v1880 = vsel %vm1104, %v1820, 0
        %v1883 = vsel %vm1104, %v1822, 0
        %v1886 = vsel %vm1104, %v1824, 0
        %v1889 = vsel %vm1104, %v1826, 0
        %v1892 = vsel %vm1104, %v1828, 0
        %v1895 = vsel %vm1104, %v1830, 0
        %v1898 = vsel %vm1104, %v1832, 0
        %v1901 = vsel %vm1104, %v1834, 0
        %v1904 = vsel %vm1104, %v1836, 0
        %v1907 = vsel %vm1104, %v1838, 0
        %v1910 = vsel %vm1104, %v1840, 0
        %v1913 = vsel %vm1104, %v1842, 0
        %1915 = vmatprep.subr.bf16.mxu0 0
        %1916 = vmatpush1.bf16.xpose.msra.mxu0 %v1868
        %1917 = vmatprep.subr.bf16.mxu0 0
        %1918 = vmatpush1.bf16.xpose.msra.mxu0 %v1871
        %1919 = vmatprep.subr.bf16.mxu0 0
        %1920 = vmatpush1.bf16.xpose.msra.mxu0 %v1874
        %1921 = vmatprep.subr.bf16.mxu0 0
        %1922 = vmatpush1.bf16.xpose.msra.mxu0 %v1877
        %1923 = vmatprep.subr.bf16.mxu0 0
        %1924 = vmatpush1.bf16.xpose.msra.mxu0 %v1880
        %1925 = vmatprep.subr.bf16.mxu0 0
        %1926 = vmatpush1.bf16.xpose.msra.mxu0 %v1883
        %1927 = vmatprep.subr.bf16.mxu0 0
        %1928 = vmatpush1.bf16.xpose.msra.mxu0 %v1886
        %1929 = vmatprep.subr.bf16.mxu0 0
        %1930 = vmatpush1.bf16.xpose.msra.mxu0 %v1889
        %1931 = vmatprep.subr.bf16.mxu0 0
        %1932 = vmatpush1.bf16.xpose.msra.mxu0 %v1892
        %1933 = vmatprep.subr.bf16.mxu0 0
        %1934 = vmatpush1.bf16.xpose.msra.mxu0 %v1895
        %1935 = vmatprep.subr.bf16.mxu0 0
        %1936 = vmatpush1.bf16.xpose.msra.mxu0 %v1898
        %1937 = vmatprep.subr.bf16.mxu0 0
        %1938 = vmatpush1.bf16.xpose.msra.mxu0 %v1901
        %1939 = vmatprep.subr.bf16.mxu0 0
        %1940 = vmatpush1.bf16.xpose.msra.mxu0 %v1904
        %1941 = vmatprep.subr.bf16.mxu0 0
        %1942 = vmatpush1.bf16.xpose.msra.mxu0 %v1907
        %1943 = vmatprep.subr.bf16.mxu0 0
        %1944 = vmatpush1.bf16.xpose.msra.mxu0 %v1910
        %1945 = vmatprep.subr.bf16.mxu0 0
        %1946 = vmatpush1.bf16.xpose.msra.mxu0 %v1913
        %1947 = vmatprep.mubr.bf16.mxu0 0
        %1948 = vmatmul.mubr.bf16.gmra.mrb[0].mxu0 %v1844
        %v1949 = vpop.f32.mrb[0].mxu0
        %v1950 = vadd.f32 0.0, %v1949
        %v1951 = vpop.f32.mrb[0].mxu0
        %v1952 = vadd.f32 0.0, %v1951
        %v1953 = vpop.f32.mrb[0].mxu0
        %v1954 = vadd.f32 0.0, %v1953
        %v1955 = vpop.f32.mrb[0].mxu0
        %v1956 = vadd.f32 0.0, %v1955
        %1957 = vmatprep.mubr.bf16.mxu0 0
        %1958 = vmatmul.mubr.bf16.gmra.mrb[0].mxu0 %v1847
        %v1959 = vpop.f32.mrb[0].mxu0
        %v1960 = vadd.f32 0.0, %v1959
        %v1961 = vpop.f32.mrb[0].mxu0
        %v1962 = vadd.f32 0.0, %v1961
        %v1963 = vpop.f32.mrb[0].mxu0
        %v1964 = vadd.f32 0.0, %v1963
        %v1965 = vpop.f32.mrb[0].mxu0
        %v1966 = vadd.f32 0.0, %v1965
        %1967 = vmatprep.mubr.bf16.mxu0 0
        %1968 = vmatmul.mubr.bf16.gmra.mrb[0].mxu0 %v1850
        %v1969 = vpop.f32.mrb[0].mxu0
        %v1970 = vadd.f32 0.0, %v1969
        %v1971 = vpop.f32.mrb[0].mxu0
        %v1972 = vadd.f32 0.0, %v1971
        %v1973 = vpop.f32.mrb[0].mxu0
        %v1974 = vadd.f32 0.0, %v1973
        %v1975 = vpop.f32.mrb[0].mxu0
        %v1976 = vadd.f32 0.0, %v1975
        %1977 = vmatprep.mubr.bf16.mxu0 0
        %1978 = vmatmul.mubr.bf16.gmra.mrb[0].mxu0 %v1853
        %v1979 = vpop.f32.mrb[0].mxu0
        %v1980 = vadd.f32 0.0, %v1979
        %v1981 = vpop.f32.mrb[0].mxu0
        %v1982 = vadd.f32 0.0, %v1981
        %v1983 = vpop.f32.mrb[0].mxu0
        %v1984 = vadd.f32 0.0, %v1983
        %v1985 = vpop.f32.mrb[0].mxu0
        %v1986 = vadd.f32 0.0, %v1985
        %1987 = vmatprep.mubr.bf16.mxu0 0
        %1988 = vmatmul.mubr.bf16.gmra.mrb[0].mxu0 %v1856
        %v1989 = vpop.f32.mrb[0].mxu0
        %v1990 = vadd.f32 0.0, %v1989
        %v1991 = vpop.f32.mrb[0].mxu0
        %v1992 = vadd.f32 0.0, %v1991
        %v1993 = vpop.f32.mrb[0].mxu0
        %v1994 = vadd.f32 0.0, %v1993
        %v1995 = vpop.f32.mrb[0].mxu0
        %v1996 = vadd.f32 0.0, %v1995
        %1997 = vmatprep.mubr.bf16.mxu0 0
        %1998 = vmatmul.mubr.bf16.gmra.mrb[0].mxu0 %v1859
        %v1999 = vpop.f32.mrb[0].mxu0
        %v2000 = vadd.f32 0.0, %v1999
        %v2001 = vpop.f32.mrb[0].mxu0
        %v2002 = vadd.f32 0.0, %v2001
        %v2003 = vpop.f32.mrb[0].mxu0
        %v2004 = vadd.f32 0.0, %v2003
        %v2005 = vpop.f32.mrb[0].mxu0
        %v2006 = vadd.f32 0.0, %v2005
        %2007 = vmatprep.mubr.bf16.mxu0 0
        %2008 = vmatmul.mubr.bf16.gmra.mrb[0].mxu0 %v1862
        %v2009 = vpop.f32.mrb[0].mxu0
        %v2010 = vadd.f32 0.0, %v2009
        %v2011 = vpop.f32.mrb[0].mxu0
        %v2012 = vadd.f32 0.0, %v2011
        %v2013 = vpop.f32.mrb[0].mxu0
        %v2014 = vadd.f32 0.0, %v2013
        %v2015 = vpop.f32.mrb[0].mxu0
        %v2016 = vadd.f32 0.0, %v2015
        %2017 = vmatprep.mubr.bf16.mxu0 0
        %2018 = vmatmul.mubr.bf16.gmra.mrb[0].mxu0 %v1865
        %v2019 = vpop.f32.mrb[0].mxu0
        %v2020 = vadd.f32 0.0, %v2019
        %v2021 = vpop.f32.mrb[0].mxu0
        %v2022 = vadd.f32 0.0, %v2021
        %v2023 = vpop.f32.mrb[0].mxu0
        %v2024 = vadd.f32 0.0, %v2023
        %v2025 = vpop.f32.mrb[0].mxu0
        %v2026 = vadd.f32 0.0, %v2025
        %2027 = vdwg.mxu0
        %v2028 = vmax.f32 %v1950, %v1952
        %2029 = vmax.xlane.f32.xlu0 %v2028
        %v2030 = vpop.xlane.xlu0 %2029
        %v2031 = vmax.f32 %v1954, %v1956
        %2032 = vmax.xlane.f32.xlu0 %v2031
        %v2033 = vpop.xlane.xlu0 %2032
        %v2034 = vmax.f32 %v1960, %v1962
        %2035 = vmax.xlane.f32.xlu0 %v2034
        %v2036 = vpop.xlane.xlu0 %2035
        %v2037 = vmax.f32 %v1964, %v1966
        %2038 = vmax.xlane.f32.xlu0 %v2037
        %v2039 = vpop.xlane.xlu0 %2038
        %v2040 = vmax.f32 %v1970, %v1972
        %2041 = vmax.xlane.f32.xlu0 %v2040
        %v2042 = vpop.xlane.xlu0 %2041
        %v2043 = vmax.f32 %v1974, %v1976
        %2044 = vmax.xlane.f32.xlu0 %v2043
        %v2045 = vpop.xlane.xlu0 %2044
        %v2046 = vmax.f32 %v1980, %v1982
        %2047 = vmax.xlane.f32.xlu0 %v2046
        %v2048 = vpop.xlane.xlu0 %2047
        %v2049 = vmax.f32 %v1984, %v1986
        %2050 = vmax.xlane.f32.xlu0 %v2049
        %v2051 = vpop.xlane.xlu0 %2050
        %v2052 = vmax.f32 %v1990, %v1992
        %2053 = vmax.xlane.f32.xlu0 %v2052
        %v2054 = vpop.xlane.xlu0 %2053
        %v2055 = vmax.f32 %v1994, %v1996
        %2056 = vmax.xlane.f32.xlu0 %v2055
        %v2057 = vpop.xlane.xlu0 %2056
        %v2058 = vmax.f32 %v2000, %v2002
        %2059 = vmax.xlane.f32.xlu0 %v2058
        %v2060 = vpop.xlane.xlu0 %2059
        %v2061 = vmax.f32 %v2004, %v2006
        %2062 = vmax.xlane.f32.xlu0 %v2061
        %v2063 = vpop.xlane.xlu0 %2062
        %v2064 = vmax.f32 %v2010, %v2012
        %2065 = vmax.xlane.f32.xlu0 %v2064
        %v2066 = vpop.xlane.xlu0 %2065
        %v2067 = vmax.f32 %v2014, %v2016
        %2068 = vmax.xlane.f32.xlu0 %v2067
        %v2069 = vpop.xlane.xlu0 %2068
        %v2070 = vmax.f32 %v2020, %v2022
        %2071 = vmax.xlane.f32.xlu0 %v2070
        %v2072 = vpop.xlane.xlu0 %2071
        %v2073 = vmax.f32 %v2024, %v2026
        %2074 = vmax.xlane.f32.xlu0 %v2073
        %v2075 = vpop.xlane.xlu0 %2074
        %v2076 = vsub.f32 %v1950, %v2030
        %v2077 = vsub.f32 %v1952, %v2030
        %v2078 = vsub.f32 %v1954, %v2033
        %v2079 = vsub.f32 %v1956, %v2033
        %v2080 = vsub.f32 %v1960, %v2036
        %v2081 = vsub.f32 %v1962, %v2036
        %v2082 = vsub.f32 %v1964, %v2039
        %v2083 = vsub.f32 %v1966, %v2039
        %v2084 = vsub.f32 %v1970, %v2042
        %v2085 = vsub.f32 %v1972, %v2042
        %v2086 = vsub.f32 %v1974, %v2045
        %v2087 = vsub.f32 %v1976, %v2045
        %v2088 = vsub.f32 %v1980, %v2048
        %v2089 = vsub.f32 %v1982, %v2048
        %v2090 = vsub.f32 %v1984, %v2051
        %v2091 = vsub.f32 %v1986, %v2051
        %v2092 = vsub.f32 %v1990, %v2054
        %v2093 = vsub.f32 %v1992, %v2054
        %v2094 = vsub.f32 %v1994, %v2057
        %v2095 = vsub.f32 %v1996, %v2057
        %v2096 = vsub.f32 %v2000, %v2060
        %v2097 = vsub.f32 %v2002, %v2060
        %v2098 = vsub.f32 %v2004, %v2063
        %v2099 = vsub.f32 %v2006, %v2063
        %v2100 = vsub.f32 %v2010, %v2066
        %v2101 = vsub.f32 %v2012, %v2066
        %v2102 = vsub.f32 %v2014, %v2069
        %v2103 = vsub.f32 %v2016, %v2069
        %v2104 = vsub.f32 %v2020, %v2072
        %v2105 = vsub.f32 %v2022, %v2072
        %v2106 = vsub.f32 %v2024, %v2075
        %v2107 = vsub.f32 %v2026, %v2075
        %v2108 = vmul.f32 %v2076, 1.442695
        %v2109 = vpow.pop %v2108
        %v2110 = vmul.f32 %v2077, 1.442695
        %v2111 = vpow.pop %v2110
        %v2112 = vmul.f32 %v2078, 1.442695
        %v2113 = vpow.pop %v2112
        %v2114 = vmul.f32 %v2079, 1.442695
        %v2115 = vpow.pop %v2114
        %v2116 = vmul.f32 %v2080, 1.442695
        %v2117 = vpow.pop %v2116
        %v2118 = vmul.f32 %v2081, 1.442695
        %v2119 = vpow.pop %v2118
        %v2120 = vmul.f32 %v2082, 1.442695
        %v2121 = vpow.pop %v2120
        %v2122 = vmul.f32 %v2083, 1.442695
        %v2123 = vpow.pop %v2122
        %v2124 = vmul.f32 %v2084, 1.442695
        %v2125 = vpow.pop %v2124
        %v2126 = vmul.f32 %v2085, 1.442695
        %v2127 = vpow.pop %v2126
        %v2128 = vmul.f32 %v2086, 1.442695
        %v2129 = vpow.pop %v2128
        %v2130 = vmul.f32 %v2087, 1.442695
        %v2131 = vpow.pop %v2130
        %v2132 = vmul.f32 %v2088, 1.442695
        %v2133 = vpow.pop %v2132
        %v2134 = vmul.f32 %v2089, 1.442695
        %v2135 = vpow.pop %v2134
        %v2136 = vmul.f32 %v2090, 1.442695
        %v2137 = vpow.pop %v2136
        %v2138 = vmul.f32 %v2091, 1.442695
        %v2139 = vpow.pop %v2138
        %v2140 = vmul.f32 %v2092, 1.442695
        %v2141 = vpow.pop %v2140
        %v2142 = vmul.f32 %v2093, 1.442695
        %v2143 = vpow.pop %v2142
        %v2144 = vmul.f32 %v2094, 1.442695
        %v2145 = vpow.pop %v2144
        %v2146 = vmul.f32 %v2095, 1.442695
        %v2147 = vpow.pop %v2146
        %v2148 = vmul.f32 %v2096, 1.442695
        %v2149 = vpow.pop %v2148
        %v2150 = vmul.f32 %v2097, 1.442695
        %v2151 = vpow.pop %v2150
        %v2152 = vmul.f32 %v2098, 1.442695
        %v2153 = vpow.pop %v2152
        %v2154 = vmul.f32 %v2099, 1.442695
        %v2155 = vpow.pop %v2154
        %v2156 = vmul.f32 %v2100, 1.442695
        %v2157 = vpow.pop %v2156
        %v2158 = vmul.f32 %v2101, 1.442695
        %v2159 = vpow.pop %v2158
        %v2160 = vmul.f32 %v2102, 1.442695
        %v2161 = vpow.pop %v2160
        %v2162 = vmul.f32 %v2103, 1.442695
        %v2163 = vpow.pop %v2162
        %v2164 = vmul.f32 %v2104, 1.442695
        %v2165 = vpow.pop %v2164
        %v2166 = vmul.f32 %v2105, 1.442695
        %v2167 = vpow.pop %v2166
        %v2168 = vmul.f32 %v2106, 1.442695
        %v2169 = vpow.pop %v2168
        %v2170 = vmul.f32 %v2107, 1.442695
        %v2171 = vpow.pop %v2170
        %v2172 = vadd.f32 %v2109, %v2111
        %2173 = vadd.xlane.f32.xlu0 %v2172
        %v2174 = vpop.xlane.xlu0 %2173
        %v2175 = vadd.f32 %v2113, %v2115
        %2176 = vadd.xlane.f32.xlu0 %v2175
        %v2177 = vpop.xlane.xlu0 %2176
        %v2178 = vadd.f32 %v2117, %v2119
        %2179 = vadd.xlane.f32.xlu0 %v2178
        %v2180 = vpop.xlane.xlu0 %2179
        %v2181 = vadd.f32 %v2121, %v2123
        %2182 = vadd.xlane.f32.xlu0 %v2181
        %v2183 = vpop.xlane.xlu0 %2182
        %v2184 = vadd.f32 %v2125, %v2127
        %2185 = vadd.xlane.f32.xlu0 %v2184
        %v2186 = vpop.xlane.xlu0 %2185
        %v2187 = vadd.f32 %v2129, %v2131
        %2188 = vadd.xlane.f32.xlu0 %v2187
        %v2189 = vpop.xlane.xlu0 %2188
        %v2190 = vadd.f32 %v2133, %v2135
        %2191 = vadd.xlane.f32.xlu0 %v2190
        %v2192 = vpop.xlane.xlu0 %2191
        %v2193 = vadd.f32 %v2137, %v2139
        %2194 = vadd.xlane.f32.xlu0 %v2193
        %v2195 = vpop.xlane.xlu0 %2194
        %v2196 = vadd.f32 %v2141, %v2143
        %2197 = vadd.xlane.f32.xlu0 %v2196
        %v2198 = vpop.xlane.xlu0 %2197
        %v2199 = vadd.f32 %v2145, %v2147
        %2200 = vadd.xlane.f32.xlu0 %v2199
        %v2201 = vpop.xlane.xlu0 %2200
        %v2202 = vadd.f32 %v2149, %v2151
        %2203 = vadd.xlane.f32.xlu0 %v2202
        %v2204 = vpop.xlane.xlu0 %2203
        %v2205 = vadd.f32 %v2153, %v2155
        %2206 = vadd.xlane.f32.xlu0 %v2205
        %v2207 = vpop.xlane.xlu0 %2206
        %v2208 = vadd.f32 %v2157, %v2159
        %2209 = vadd.xlane.f32.xlu0 %v2208
        %v2210 = vpop.xlane.xlu0 %2209
        %v2211 = vadd.f32 %v2161, %v2163
        %2212 = vadd.xlane.f32.xlu0 %v2211
        %v2213 = vpop.xlane.xlu0 %2212
        %v2214 = vadd.f32 %v2165, %v2167
        %2215 = vadd.xlane.f32.xlu0 %v2214
        %v2216 = vpop.xlane.xlu0 %2215
        %v2217 = vadd.f32 %v2169, %v2171
        %2218 = vadd.xlane.f32.xlu0 %v2217
        %v2219 = vpop.xlane.xlu0 %2218
        %v2220 = vrcp.pop %v2174
        %v2221 = vmul.f32 1.0, %v2220
        %v2222 = vrcp.pop %v2177
        %v2223 = vmul.f32 1.0, %v2222
        %v2224 = vrcp.pop %v2180
        %v2225 = vmul.f32 1.0, %v2224
        %v2226 = vrcp.pop %v2183
        %v2227 = vmul.f32 1.0, %v2226
        %v2228 = vrcp.pop %v2186
        %v2229 = vmul.f32 1.0, %v2228
        %v2230 = vrcp.pop %v2189
        %v2231 = vmul.f32 1.0, %v2230
        %v2232 = vrcp.pop %v2192
        %v2233 = vmul.f32 1.0, %v2232
        %v2234 = vrcp.pop %v2195
        %v2235 = vmul.f32 1.0, %v2234
        %v2236 = vrcp.pop %v2198
        %v2237 = vmul.f32 1.0, %v2236
        %v2238 = vrcp.pop %v2201
        %v2239 = vmul.f32 1.0, %v2238
        %v2240 = vrcp.pop %v2204
        %v2241 = vmul.f32 1.0, %v2240
        %v2242 = vrcp.pop %v2207
        %v2243 = vmul.f32 1.0, %v2242
        %v2244 = vrcp.pop %v2210
        %v2245 = vmul.f32 1.0, %v2244
        %v2246 = vrcp.pop %v2213
        %v2247 = vmul.f32 1.0, %v2246
        %v2248 = vrcp.pop %v2216
        %v2249 = vmul.f32 1.0, %v2248
        %v2250 = vrcp.pop %v2219
        %v2251 = vmul.f32 1.0, %v2250
        %v2252 = vmul.f32 %v2109, %v2221
        %v2253 = vmul.f32 %v2111, %v2221
        %v2254 = vmul.f32 %v2113, %v2223
        %v2255 = vmul.f32 %v2115, %v2223
        %v2256 = vmul.f32 %v2117, %v2225
        %v2257 = vmul.f32 %v2119, %v2225
        %v2258 = vmul.f32 %v2121, %v2227
        %v2259 = vmul.f32 %v2123, %v2227
        %v2260 = vmul.f32 %v2125, %v2229
        %v2261 = vmul.f32 %v2127, %v2229
        %v2262 = vmul.f32 %v2129, %v2231
        %v2263 = vmul.f32 %v2131, %v2231
        %v2264 = vmul.f32 %v2133, %v2233
        %v2265 = vmul.f32 %v2135, %v2233
        %v2266 = vmul.f32 %v2137, %v2235
        %v2267 = vmul.f32 %v2139, %v2235
        %v2268 = vmul.f32 %v2141, %v2237
        %v2269 = vmul.f32 %v2143, %v2237
        %v2270 = vmul.f32 %v2145, %v2239
        %v2271 = vmul.f32 %v2147, %v2239
        %v2272 = vmul.f32 %v2149, %v2241
        %v2273 = vmul.f32 %v2151, %v2241
        %v2274 = vmul.f32 %v2153, %v2243
        %v2275 = vmul.f32 %v2155, %v2243
        %v2276 = vmul.f32 %v2157, %v2245
        %v2277 = vmul.f32 %v2159, %v2245
        %v2278 = vmul.f32 %v2161, %v2247
        %v2279 = vmul.f32 %v2163, %v2247
        %v2280 = vmul.f32 %v2165, %v2249
        %v2281 = vmul.f32 %v2167, %v2249
        %v2282 = vmul.f32 %v2169, %v2251
        %v2283 = vmul.f32 %v2171, %v2251
        %v2284 = vpack.c.bf16 %v2254, %v2252
        %v2285 = vpack.c.bf16 %v2255, %v2253
        %v2286 = vpack.c.bf16 %v2258, %v2256
        %v2287 = vpack.c.bf16 %v2259, %v2257
        %v2288 = vpack.c.bf16 %v2262, %v2260
        %v2289 = vpack.c.bf16 %v2263, %v2261
        %v2290 = vpack.c.bf16 %v2266, %v2264
        %v2291 = vpack.c.bf16 %v2267, %v2265
        %v2292 = vpack.c.bf16 %v2270, %v2268
        %v2293 = vpack.c.bf16 %v2271, %v2269
        %v2294 = vpack.c.bf16 %v2274, %v2272
        %v2295 = vpack.c.bf16 %v2275, %v2273
        %v2296 = vpack.c.bf16 %v2278, %v2276
        %v2297 = vpack.c.bf16 %v2279, %v2277
        %v2298 = vpack.c.bf16 %v2282, %v2280
        %v2299 = vpack.c.bf16 %v2283, %v2281
        %v2316 = vunpack.c.l.b16 %v2284
        %v2317 = vunpack.c.l.b16 %v2285
        %v2318 = vunpack.c.h.b16 %v2284
        %v2319 = vunpack.c.h.b16 %v2285
        %v2320 = vunpack.c.l.b16 %v2286
        %v2321 = vunpack.c.l.b16 %v2287
        %v2322 = vunpack.c.h.b16 %v2286
        %v2323 = vunpack.c.h.b16 %v2287
        %v2324 = vunpack.c.l.b16 %v2288
        %v2325 = vunpack.c.l.b16 %v2289
        %v2326 = vunpack.c.h.b16 %v2288
        %v2327 = vunpack.c.h.b16 %v2289
        %v2328 = vunpack.c.l.b16 %v2290
        %v2329 = vunpack.c.l.b16 %v2291
        %v2330 = vunpack.c.h.b16 %v2290
        %v2331 = vunpack.c.h.b16 %v2291
        %v2332 = vunpack.c.l.b16 %v2292
        %v2333 = vunpack.c.l.b16 %v2293
        %v2334 = vunpack.c.h.b16 %v2292
        %v2335 = vunpack.c.h.b16 %v2293
        %v2336 = vunpack.c.l.b16 %v2294
        %v2337 = vunpack.c.l.b16 %v2295
        %v2338 = vunpack.c.h.b16 %v2294
        %v2339 = vunpack.c.h.b16 %v2295
        %v2340 = vunpack.c.l.b16 %v2296
        %v2341 = vunpack.c.l.b16 %v2297
        %v2342 = vunpack.c.h.b16 %v2296
        %v2343 = vunpack.c.h.b16 %v2297
        %v2344 = vunpack.c.l.b16 %v2298
        %v2345 = vunpack.c.l.b16 %v2299
        %v2346 = vunpack.c.h.b16 %v2298
        %v2347 = vunpack.c.h.b16 %v2299
        %v2348 = vpack.c.b16 %v2317, %v2316
        %v2349 = vpack.c.b16 %v2319, %v2318
        %v2350 = vpack.c.b16 %v2321, %v2320
        %v2351 = vpack.c.b16 %v2323, %v2322
        %v2352 = vpack.c.b16 %v2325, %v2324
        %v2353 = vpack.c.b16 %v2327, %v2326
        %v2354 = vpack.c.b16 %v2329, %v2328
        %v2355 = vpack.c.b16 %v2331, %v2330
        %v2356 = vpack.c.b16 %v2333, %v2332
        %v2357 = vpack.c.b16 %v2335, %v2334
        %v2358 = vpack.c.b16 %v2337, %v2336
        %v2359 = vpack.c.b16 %v2339, %v2338
        %v2360 = vpack.c.b16 %v2341, %v2340
        %v2361 = vpack.c.b16 %v2343, %v2342
        %v2362 = vpack.c.b16 %v2345, %v2344
        %v2363 = vpack.c.b16 %v2347, %v2346
        %s2380 = scalar_lea.vmem %s299, 128 [#allocation5]
        %2381 = vst [vmem:[%s2380] sm:$0xff] %v2348
        %2382 = vst [vmem:[%s2380 + $0x8] sm:$0xff] %v2349
        %2383 = vst [vmem:[%s2380 + $0x10] sm:$0xff] %v2350
        %2384 = vst [vmem:[%s2380 + $0x18] sm:$0xff] %v2351
        %2385 = vst [vmem:[%s2380 + $0x20] sm:$0xff] %v2352
        %2386 = vst [vmem:[%s2380 + $0x28] sm:$0xff] %v2353
        %2387 = vst [vmem:[%s2380 + $0x30] sm:$0xff] %v2354
        %2388 = vst [vmem:[%s2380 + $0x38] sm:$0xff] %v2355
        %2389 = vst [vmem:[%s2380 + $0x40] sm:$0xff] %v2356
        %2390 = vst [vmem:[%s2380 + $0x48] sm:$0xff] %v2357
        %2391 = vst [vmem:[%s2380 + $0x50] sm:$0xff] %v2358
        %2392 = vst [vmem:[%s2380 + $0x58] sm:$0xff] %v2359
        %2393 = vst [vmem:[%s2380 + $0x60] sm:$0xff] %v2360
        %2394 = vst [vmem:[%s2380 + $0x68] sm:$0xff] %v2361
        %2395 = vst [vmem:[%s2380 + $0x70] sm:$0xff] %v2362
        %2396 = vst [vmem:[%s2380 + $0x78] sm:$0xff] %v2363
        %2413 = vrot.lane.b32.xlu0 %v1088, 96
        %v2414 = vpop.permute.xlu0 %2413
        %2415 = vrot.lane.b32.xlu0 %v1089, 96
        %v2416 = vpop.permute.xlu0 %2415
        %2417 = vrot.lane.b32.xlu0 %v1090, 96
        %v2418 = vpop.permute.xlu0 %2417
        %2419 = vrot.lane.b32.xlu0 %v1091, 96
        %v2420 = vpop.permute.xlu0 %2419
        %2421 = vrot.lane.b32.xlu0 %v1092, 96
        %v2422 = vpop.permute.xlu0 %2421
        %2423 = vrot.lane.b32.xlu0 %v1093, 96
        %v2424 = vpop.permute.xlu0 %2423
        %2425 = vrot.lane.b32.xlu0 %v1094, 96
        %v2426 = vpop.permute.xlu0 %2425
        %2427 = vrot.lane.b32.xlu0 %v1095, 96
        %v2428 = vpop.permute.xlu0 %2427
        %2429 = vrot.lane.b32.xlu0 %v1096, 96
        %v2430 = vpop.permute.xlu0 %2429
        %2431 = vrot.lane.b32.xlu0 %v1097, 96
        %v2432 = vpop.permute.xlu0 %2431
        %2433 = vrot.lane.b32.xlu0 %v1098, 96
        %v2434 = vpop.permute.xlu0 %2433
        %2435 = vrot.lane.b32.xlu0 %v1099, 96
        %v2436 = vpop.permute.xlu0 %2435
        %2437 = vrot.lane.b32.xlu0 %v1100, 96
        %v2438 = vpop.permute.xlu0 %2437
        %2439 = vrot.lane.b32.xlu0 %v1101, 96
        %v2440 = vpop.permute.xlu0 %2439
        %2441 = vrot.lane.b32.xlu0 %v1102, 96
        %v2442 = vpop.permute.xlu0 %2441
        %2443 = vrot.lane.b32.xlu0 %v1103, 96
        %v2444 = vpop.permute.xlu0 %2443
        %2461 = vmatprep.subr.bf16.mxu0 0
        %2462 = vmatpush1.bf16.msra.mxu0 %v2414
        %2463 = vmatprep.subr.bf16.mxu0 0
        %2464 = vmatpush1.bf16.msra.mxu0 %v2416
        %2465 = vmatprep.subr.bf16.mxu0 0
        %2466 = vmatpush1.bf16.msra.mxu0 %v2418
        %2467 = vmatprep.subr.bf16.mxu0 0
        %2468 = vmatpush1.bf16.msra.mxu0 %v2420
        %2469 = vmatprep.subr.bf16.mxu0 0
        %2470 = vmatpush1.bf16.msra.mxu0 %v2422
        %2471 = vmatprep.subr.bf16.mxu0 0
        %2472 = vmatpush1.bf16.msra.mxu0 %v2424
        %2473 = vmatprep.subr.bf16.mxu0 0
        %2474 = vmatpush1.bf16.msra.mxu0 %v2426
        %2475 = vmatprep.subr.bf16.mxu0 0
        %2476 = vmatpush1.bf16.msra.mxu0 %v2428
        %2477 = vmatprep.subr.bf16.mxu0 0
        %2478 = vmatpush1.bf16.msra.mxu0 %v2430
        %2479 = vmatprep.subr.bf16.mxu0 0
        %2480 = vmatpush1.bf16.msra.mxu0 %v2432
        %2481 = vmatprep.subr.bf16.mxu0 0
        %2482 = vmatpush1.bf16.msra.mxu0 %v2434
        %2483 = vmatprep.subr.bf16.mxu0 0
        %2484 = vmatpush1.bf16.msra.mxu0 %v2436
        %2485 = vmatprep.subr.bf16.mxu0 0
        %2486 = vmatpush1.bf16.msra.mxu0 %v2438
        %2487 = vmatprep.subr.bf16.mxu0 0
        %2488 = vmatpush1.bf16.msra.mxu0 %v2440
        %2489 = vmatprep.subr.bf16.mxu0 0
        %2490 = vmatpush1.bf16.msra.mxu0 %v2442
        %2491 = vmatprep.subr.bf16.mxu0 0
        %2492 = vmatpush1.bf16.msra.mxu0 %v2444
        %2493 = vmatprep.mubr.bf16.mxu0 %v2285
        %2494 = vmatmul.mubr.bf16.gmra.mrb[0].mxu0 %v2284
        %v2495 = vpop.f32.mrb[0].mxu0
        %v2496 = vadd.f32 0.0, %v2495
        %v2497 = vpop.f32.mrb[0].mxu0
        %v2498 = vpop.f32.mrb[0].mxu0
        %v2499 = vadd.f32 0.0, %v2498
        %v2500 = vpop.f32.mrb[0].mxu0
        %2501 = vmatprep.mubr.bf16.mxu0 %v2287
        %2502 = vmatmul.mubr.bf16.gmra.mrb[0].mxu0 %v2286
        %v2503 = vpop.f32.mrb[0].mxu0
        %v2504 = vadd.f32 0.0, %v2503
        %v2505 = vpop.f32.mrb[0].mxu0
        %v2506 = vpop.f32.mrb[0].mxu0
        %v2507 = vadd.f32 0.0, %v2506
        %v2508 = vpop.f32.mrb[0].mxu0
        %2509 = vmatprep.mubr.bf16.mxu0 %v2289
        %2510 = vmatmul.mubr.bf16.gmra.mrb[0].mxu0 %v2288
        %v2511 = vpop.f32.mrb[0].mxu0
        %v2512 = vadd.f32 0.0, %v2511
        %v2513 = vpop.f32.mrb[0].mxu0
        %v2514 = vpop.f32.mrb[0].mxu0
        %v2515 = vadd.f32 0.0, %v2514
        %v2516 = vpop.f32.mrb[0].mxu0
        %2517 = vmatprep.mubr.bf16.mxu0 %v2291
        %2518 = vmatmul.mubr.bf16.gmra.mrb[0].mxu0 %v2290
        %v2519 = vpop.f32.mrb[0].mxu0
        %v2520 = vadd.f32 0.0, %v2519
        %v2521 = vpop.f32.mrb[0].mxu0
        %v2522 = vpop.f32.mrb[0].mxu0
        %v2523 = vadd.f32 0.0, %v2522
        %v2524 = vpop.f32.mrb[0].mxu0
        %2525 = vmatprep.mubr.bf16.mxu0 %v2293
        %2526 = vmatmul.mubr.bf16.gmra.mrb[0].mxu0 %v2292
        %v2527 = vpop.f32.mrb[0].mxu0
        %v2528 = vadd.f32 0.0, %v2527
        %v2529 = vpop.f32.mrb[0].mxu0
        %v2530 = vpop.f32.mrb[0].mxu0
        %v2531 = vadd.f32 0.0, %v2530
        %v2532 = vpop.f32.mrb[0].mxu0
        %2533 = vmatprep.mubr.bf16.mxu0 %v2295
        %2534 = vmatmul.mubr.bf16.gmra.mrb[0].mxu0 %v2294
        %v2535 = vpop.f32.mrb[0].mxu0
        %v2536 = vadd.f32 0.0, %v2535
        %v2537 = vpop.f32.mrb[0].mxu0
        %v2538 = vpop.f32.mrb[0].mxu0
        %v2539 = vadd.f32 0.0, %v2538
        %v2540 = vpop.f32.mrb[0].mxu0
        %2541 = vmatprep.mubr.bf16.mxu0 %v2297
        %2542 = vmatmul.mubr.bf16.gmra.mrb[0].mxu0 %v2296
        %v2543 = vpop.f32.mrb[0].mxu0
        %v2544 = vadd.f32 0.0, %v2543
        %v2545 = vpop.f32.mrb[0].mxu0
        %v2546 = vpop.f32.mrb[0].mxu0
        %v2547 = vadd.f32 0.0, %v2546
        %v2548 = vpop.f32.mrb[0].mxu0
        %2549 = vmatprep.mubr.bf16.mxu0 %v2299
        %2550 = vmatmul.mubr.bf16.gmra.mrb[0].mxu0 %v2298
        %v2551 = vpop.f32.mrb[0].mxu0
        %v2552 = vadd.f32 0.0, %v2551
        %v2553 = vpop.f32.mrb[0].mxu0
        %v2554 = vpop.f32.mrb[0].mxu0
        %v2555 = vadd.f32 0.0, %v2554
        %v2556 = vpop.f32.mrb[0].mxu0
        %2557 = vdwg.mxu0
        %v2558 = vpack.c.bf16 %v2499, %v2496
        %v2559 = vpack.c.bf16 %v2507, %v2504
        %v2560 = vpack.c.bf16 %v2515, %v2512
        %v2561 = vpack.c.bf16 %v2523, %v2520
        %v2562 = vpack.c.bf16 %v2531, %v2528
        %v2563 = vpack.c.bf16 %v2539, %v2536
        %v2564 = vpack.c.bf16 %v2547, %v2544
        %v2565 = vpack.c.bf16 %v2555, %v2552
        %2574 = vrot.lane.b32.xlu0 %v2558, 32
        %v2575 = vpop.permute.xlu0 %2574
        %2576 = vrot.lane.b32.xlu0 %v2559, 32
        %v2577 = vpop.permute.xlu0 %2576
        %2578 = vrot.lane.b32.xlu0 %v2560, 32
        %v2579 = vpop.permute.xlu0 %2578
        %2580 = vrot.lane.b32.xlu0 %v2561, 32
        %v2581 = vpop.permute.xlu0 %2580
        %2582 = vrot.lane.b32.xlu0 %v2562, 32
        %v2583 = vpop.permute.xlu0 %2582
        %2584 = vrot.lane.b32.xlu0 %v2563, 32
        %v2585 = vpop.permute.xlu0 %2584
        %2586 = vrot.lane.b32.xlu0 %v2564, 32
        %v2587 = vpop.permute.xlu0 %2586
        %2588 = vrot.lane.b32.xlu0 %v2565, 32
        %v2589 = vpop.permute.xlu0 %2588
        %vm2598 = vcmask 523520
        %2599 = vst.msk [vmem:[#allocation4] sm:$0xff] %vm2598, %v2575
        %2600 = vst.msk [vmem:[#allocation4 + $0x8] sm:$0xff] %vm2598, %v2577
        %2601 = vst.msk [vmem:[#allocation4 + $0x10] sm:$0xff] %vm2598, %v2579
        %2602 = vst.msk [vmem:[#allocation4 + $0x18] sm:$0xff] %vm2598, %v2581
        %2603 = vst.msk [vmem:[#allocation4 + $0x20] sm:$0xff] %vm2598, %v2583
        %2604 = vst.msk [vmem:[#allocation4 + $0x28] sm:$0xff] %vm2598, %v2585
        %2605 = vst.msk [vmem:[#allocation4 + $0x30] sm:$0xff] %vm2598, %v2587
        %2606 = vst.msk [vmem:[#allocation4 + $0x38] sm:$0xff] %vm2598, %v2589
        %v2607 = vld [vmem:[#allocation4] sm:$0xff]
        %v2608 = vld [vmem:[#allocation4 + $0x8] sm:$0xff]
        %v2609 = vld [vmem:[#allocation4 + $0x10] sm:$0xff]
        %v2610 = vld [vmem:[#allocation4 + $0x18] sm:$0xff]
        %v2611 = vld [vmem:[#allocation4 + $0x20] sm:$0xff]
        %v2612 = vld [vmem:[#allocation4 + $0x28] sm:$0xff]
        %v2613 = vld [vmem:[#allocation4 + $0x30] sm:$0xff]
        %v2614 = vld [vmem:[#allocation4 + $0x38] sm:$0xff]
        %v2615 = vld [vmem:[%s4] sm:$0xf]
        %v2616 = vld [vmem:[%s4 + $0x4] sm:$0xf]
        %v2617 = vld [vmem:[%s4 + $0x8] sm:$0xf]
        %v2618 = vld [vmem:[%s4 + $0xc] sm:$0xf]
        %v2619 = vld [vmem:[%s4 + $0x10] sm:$0xf]
        %v2620 = vld [vmem:[%s4 + $0x14] sm:$0xf]
        %v2621 = vld [vmem:[%s4 + $0x18] sm:$0xf]
        %v2622 = vld [vmem:[%s4 + $0x1c] sm:$0xf]
        %v2623 = vld [vmem:[%s5] sm:$0x1]
        %v2625 = vlaneseq
        %v2626 = vshrl.u32 %v2625, 7
        %v2627 = vsub.s32 0, %v2626
        %v2628 = vrot.slane %v2623, %v2627
        %v2638 = vunpack.c.l.b16 %v2615
        %v2639 = vunpack.c.l.b16 %v2616
        %v2640 = vunpack.c.l.b16 %v2617
        %v2641 = vunpack.c.l.b16 %v2618
        %v2642 = vunpack.c.l.b16 %v2619
        %v2643 = vunpack.c.l.b16 %v2620
        %v2644 = vunpack.c.l.b16 %v2621
        %v2645 = vunpack.c.l.b16 %v2622
        %v2646 = vpack.c.b16 %v2639, %v2638
        %v2647 = vpack.c.b16 %v2641, %v2640
        %v2648 = vpack.c.b16 %v2643, %v2642
        %v2649 = vpack.c.b16 %v2645, %v2644
        %v2655 = vsel %vm926, %v2607, 0
        %v2658 = vsel %vm926, %v2608, 0
        %v2661 = vsel %vm926, %v2609, 0
        %v2664 = vsel %vm926, %v2610, 0
        %v2667 = vsel %vm926, %v2611, 0
        %v2670 = vsel %vm926, %v2612, 0
        %v2673 = vsel %vm926, %v2613, 0
        %v2676 = vsel %vm926, %v2614, 0
        %2678 = vmatprep.subr.bf16.mxu0 0
        %2679 = vmatpush1.bf16.msra.mxu0 %v2646
        %2680 = vmatprep.subr.bf16.mxu0 0
        %2681 = vmatpush1.bf16.msra.mxu0 %v2647
        %2682 = vmatprep.subr.bf16.mxu0 0
        %2683 = vmatpush1.bf16.msra.mxu0 %v2648
        %2684 = vmatprep.subr.bf16.mxu0 0
        %2685 = vmatpush1.bf16.msra.mxu0 %v2649
        %2686 = vmatprep.subr.bf16.mxu0 0
        %2687 = vmatpush1.bf16.msra.mxu0 0
        %2688 = vmatprep.subr.bf16.mxu0 0
        %2689 = vmatpush1.bf16.msra.mxu0 0
        %2690 = vmatprep.subr.bf16.mxu0 0
        %2691 = vmatpush1.bf16.msra.mxu0 0
        %2692 = vmatprep.subr.bf16.mxu0 0
        %2693 = vmatpush1.bf16.msra.mxu0 0
        %2694 = vmatprep.subr.bf16.mxu0 0
        %2695 = vmatpush1.bf16.msra.mxu0 0
        %2696 = vmatprep.subr.bf16.mxu0 0
        %2697 = vmatpush1.bf16.msra.mxu0 0
        %2698 = vmatprep.subr.bf16.mxu0 0
        %2699 = vmatpush1.bf16.msra.mxu0 0
        %2700 = vmatprep.subr.bf16.mxu0 0
        %2701 = vmatpush1.bf16.msra.mxu0 0
        %2702 = vmatprep.subr.bf16.mxu0 0
        %2703 = vmatpush1.bf16.msra.mxu0 0
        %2704 = vmatprep.subr.bf16.mxu0 0
        %2705 = vmatpush1.bf16.msra.mxu0 0
        %2706 = vmatprep.subr.bf16.mxu0 0
        %2707 = vmatpush1.bf16.msra.mxu0 0
        %2708 = vmatprep.subr.bf16.mxu0 0
        %2709 = vmatpush1.bf16.msra.mxu0 0
        %2710 = vmatprep.mubr.bf16.mxu0 0
        %2711 = vmatmul.mubr.bf16.gmra.mrb[0].mxu0 %v2655
        %v2712 = vpop.f32.mrb[0].mxu0
        %v2713 = vadd.f32 %v2628, %v2712
        %v2714 = vpop.f32.mrb[0].mxu0
        %v2715 = vpop.f32.mrb[0].mxu0
        %v2716 = vadd.f32 %v2628, %v2715
        %v2717 = vpop.f32.mrb[0].mxu0
        %2718 = vmatprep.mubr.bf16.mxu0 0
        %2719 = vmatmul.mubr.bf16.gmra.mrb[0].mxu0 %v2658
        %v2720 = vpop.f32.mrb[0].mxu0
        %v2721 = vadd.f32 %v2628, %v2720
        %v2722 = vpop.f32.mrb[0].mxu0
        %v2723 = vpop.f32.mrb[0].mxu0
        %v2724 = vadd.f32 %v2628, %v2723
        %v2725 = vpop.f32.mrb[0].mxu0
        %2726 = vmatprep.mubr.bf16.mxu0 0
        %2727 = vmatmul.mubr.bf16.gmra.mrb[0].mxu0 %v2661
        %v2728 = vpop.f32.mrb[0].mxu0
        %v2729 = vadd.f32 %v2628, %v2728
        %v2730 = vpop.f32.mrb[0].mxu0
        %v2731 = vpop.f32.mrb[0].mxu0
        %v2732 = vadd.f32 %v2628, %v2731
        %v2733 = vpop.f32.mrb[0].mxu0
        %2734 = vmatprep.mubr.bf16.mxu0 0
        %2735 = vmatmul.mubr.bf16.gmra.mrb[0].mxu0 %v2664
        %v2736 = vpop.f32.mrb[0].mxu0
        %v2737 = vadd.f32 %v2628, %v2736
        %v2738 = vpop.f32.mrb[0].mxu0
        %v2739 = vpop.f32.mrb[0].mxu0
        %v2740 = vadd.f32 %v2628, %v2739
        %v2741 = vpop.f32.mrb[0].mxu0
        %2742 = vmatprep.mubr.bf16.mxu0 0
        %2743 = vmatmul.mubr.bf16.gmra.mrb[0].mxu0 %v2667
        %v2744 = vpop.f32.mrb[0].mxu0
        %v2745 = vadd.f32 %v2628, %v2744
        %v2746 = vpop.f32.mrb[0].mxu0
        %v2747 = vpop.f32.mrb[0].mxu0
        %v2748 = vadd.f32 %v2628, %v2747
        %v2749 = vpop.f32.mrb[0].mxu0
        %2750 = vmatprep.mubr.bf16.mxu0 0
        %2751 = vmatmul.mubr.bf16.gmra.mrb[0].mxu0 %v2670
        %v2752 = vpop.f32.mrb[0].mxu0
        %v2753 = vadd.f32 %v2628, %v2752
        %v2754 = vpop.f32.mrb[0].mxu0
        %v2755 = vpop.f32.mrb[0].mxu0
        %v2756 = vadd.f32 %v2628, %v2755
        %v2757 = vpop.f32.mrb[0].mxu0
        %2758 = vmatprep.mubr.bf16.mxu0 0
        %2759 = vmatmul.mubr.bf16.gmra.mrb[0].mxu0 %v2673
        %v2760 = vpop.f32.mrb[0].mxu0
        %v2761 = vadd.f32 %v2628, %v2760
        %v2762 = vpop.f32.mrb[0].mxu0
        %v2763 = vpop.f32.mrb[0].mxu0
        %v2764 = vadd.f32 %v2628, %v2763
        %v2765 = vpop.f32.mrb[0].mxu0
        %2766 = vmatprep.mubr.bf16.mxu0 0
        %2767 = vmatmul.mubr.bf16.gmra.mrb[0].mxu0 %v2676
        %v2768 = vpop.f32.mrb[0].mxu0
        %v2769 = vadd.f32 %v2628, %v2768
        %v2770 = vpop.f32.mrb[0].mxu0
        %v2771 = vpop.f32.mrb[0].mxu0
        %v2772 = vadd.f32 %v2628, %v2771
        %v2773 = vpop.f32.mrb[0].mxu0
        %2774 = vdwg.mxu0
        %2775 = vst.msk [vmem:[%s313] sm:$0xff] %vm926, %v2713
        %2776 = vst.msk [vmem:[%s313 + $0x8] sm:$0xff] %vm926, %v2716
        %2777 = vst.msk [vmem:[%s313 + $0x10] sm:$0xff] %vm926, %v2721
        %2778 = vst.msk [vmem:[%s313 + $0x18] sm:$0xff] %vm926, %v2724
        %2779 = vst.msk [vmem:[%s313 + $0x20] sm:$0xff] %vm926, %v2729
        %2780 = vst.msk [vmem:[%s313 + $0x28] sm:$0xff] %vm926, %v2732
        %2781 = vst.msk [vmem:[%s313 + $0x30] sm:$0xff] %vm926, %v2737
        %2782 = vst.msk [vmem:[%s313 + $0x38] sm:$0xff] %vm926, %v2740
        %2783 = vst.msk [vmem:[%s313 + $0x40] sm:$0xff] %vm926, %v2745
        %2784 = vst.msk [vmem:[%s313 + $0x48] sm:$0xff] %vm926, %v2748
        %2785 = vst.msk [vmem:[%s313 + $0x50] sm:$0xff] %vm926, %v2753
        %2786 = vst.msk [vmem:[%s313 + $0x58] sm:$0xff] %vm926, %v2756
        %2787 = vst.msk [vmem:[%s313 + $0x60] sm:$0xff] %vm926, %v2761
        %2788 = vst.msk [vmem:[%s313 + $0x68] sm:$0xff] %vm926, %v2764
        %2789 = vst.msk [vmem:[%s313 + $0x70] sm:$0xff] %vm926, %v2769
        %2790 = vst.msk [vmem:[%s313 + $0x78] sm:$0xff] %vm926, %v2772
        %s2791 = smul.u32 16, %s27
        %p2792 = scmp.lt.s32.totalorder %s26, 1
        %s2793 = scalar_select %p2792, %s26, 1
        %p2794 = scmp.lt.s32.totalorder %s2791, 31
        %s2795 = scalar_select %p2794, %s2791, 31
        %s2796 = smul.addr %s2793, 32
        %s2797 = sadd.s32 %s2795, %s2796
        %s2798 = smul.addr %s2797, 8
        %s2799 = scalar_lea.vmem %s6, %s2798
        %s2800 = sand.u32 %s203, 1
        %s2801 = scalar_lea.sflag [#allocation6], %s2800
        %s2802 = sand.u32 %s203, 1
        %s2803 = smul.addr %s2802, 256
        %s2804 = scalar_lea.vmem [#allocation5], %s2803
        // Predicated region
        $region49: #{tpu_custom_call.1} parent=43 // pred_check
          %p2805 = pneg %p185
        $region50: #{tpu_custom_call.1} parent=43 // pred_check_branch
          %2807 = sbr.rel (%p2805) target = $region52
        $region51: #{tpu_custom_call.1} parent=43 // pred_region
          %s2808 = smul.u32 16, %s27
        $region52: #{tpu_custom_call.1} parent=43 // pred_fallthru
          _
        // Predicated region
        $region53: #{tpu_custom_call.1} parent=43 // pred_check
          %p2809 = pneg %p213
        $region54: #{tpu_custom_call.1} parent=43 // pred_check_branch
          %2811 = sbr.rel (%p2809) target = $region56
        $region55: #{tpu_custom_call.1} parent=43 // pred_region
          #allocation8 [shape = 'u32[6]{0}', space=smem, size = 0x18, scoped, tag = 'DMA stride descriptor']
          %s2812 = smul.u32 16, %s27
          %s2814 = ssub.s32 4096, 4096
          %2815 = vsyncadd %s2801, %s2814
          %s2816 = smul.addr %s2812, 2
          %s2817 = smul.addr %s26, 128
          %s2818 = sadd.s32 %s2816, %s2817
          %s2819 = smul.addr %s2818, 64
          %s2820 = scalar_lea.hbm %s7, %s2819
          %s2822 = sshll.u32 1, 14
          %s2823 = sxor.u32 4294967295, %s2822
          %s2826 = sshll.u32 7, 18
          %s2827 = sxor.u32 4294967295, %s2826
          %s2828 = sand.u32 0, %s2827
          %s2830 = sor.u32 %s2828, 0
          %s2832 = sshll.u32 3, 24
          %s2833 = sxor.u32 4294967295, %s2832
          %s2834 = sand.u32 %s2830, %s2833
          %s2836 = sor.u32 %s2834, 0
          %s2837 = sshll.u32 %s2804, 4
          %s2838 = int_to_ptr.vmem [resolvable:$true] %s2837
          %2844 = sst [smem:[#allocation8]] 2048
          %s2845 = scalar_lea.smem [#allocation8], 1
          %2846 = sst [smem:[%s2845]] 4096
          %s2847 = scalar_lea.smem [#allocation8], 2
          %2848 = sst [smem:[%s2847]] 16
          %s2849 = scalar_lea.smem [#allocation8], 3
          %2850 = sst [smem:[%s2849]] 128
          %s2851 = scalar_lea.smem [#allocation8], 4
          %2852 = sst [smem:[%s2851]] 128
          %s2853 = scalar_lea.smem [#allocation8], 5
          %2854 = sst [smem:[%s2853]] 8
          %2856 = dma.general %s2838, 4096, %s2820, %s2801, [#allocation7], [#allocation8], %s2836, 0
        $region56: #{tpu_custom_call.1} parent=43 // pred_fallthru
          _
      $region44: #{tpu_custom_call.1} parent=5 // pred_fallthru
        _
      %p2857 = scmp.le.s32.totalorder 2, %s17
      // Predicated region
      $region57: #{tpu_custom_call.1} parent=5 // pred_check
        %p2858 = pneg %p2857
      $region58: #{tpu_custom_call.1} parent=5 // pred_check_branch
        %2860 = sbr.rel (%p2858) target = $region60
      $region59: #{tpu_custom_call.1} parent=5 // pred_region
        %s2861 = ssub.s32 %s17, 2
        // Predicated region
        $region61: #{tpu_custom_call.1} parent=59 // pred_check
          %p2862 = pneg %p191
        $region62: #{tpu_custom_call.1} parent=59 // pred_check_branch
          %2864 = sbr.rel (%p2862) target = $region64
        $region63: #{tpu_custom_call.1} parent=59 // pred_region
          %s2865 = smul.u32 16, %s29
          %p2866 = scmp.lt.s32.totalorder %s28, 1
          %s2867 = scalar_select %p2866, %s28, 1
          %p2868 = scmp.lt.s32.totalorder %s2865, 31
          %s2869 = scalar_select %p2868, %s2865, 31
          %s2870 = smul.addr %s2867, 32
          %s2871 = sadd.s32 %s2869, %s2870
          %s2872 = smul.addr %s2871, 8
          %s2873 = scalar_lea.vmem %s6, %s2872
        $region64: #{tpu_custom_call.1} parent=59 // pred_fallthru
          _
        // Predicated region
        $region65: #{tpu_custom_call.1} parent=59 // pred_check
          %p2874 = pneg %p219
        $region66: #{tpu_custom_call.1} parent=59 // pred_check_branch
          %2876 = sbr.rel (%p2874) target = $region68
        $region67: #{tpu_custom_call.1} parent=59 // pred_region
          %s2877 = sand.u32 %s204, 1
          %s2878 = scalar_lea.sflag [#allocation6], %s2877
          %s2879 = sand.u32 %s204, 1
          %s2880 = smul.addr %s2879, 256
          %s2881 = scalar_lea.vmem [#allocation5], %s2880
          %2882 = dma.done %s2878, 4096
        $region68: #{tpu_custom_call.1} parent=59 // pred_fallthru
          _
      $region60: #{tpu_custom_call.1} parent=5 // pred_fallthru
        _
    $region6: #{tpu_custom_call.1} parent=1 // loop_footer
      %s21 = sadd.s32 1, %s17
    $region7: #{tpu_custom_call.1} parent=1 // loop_footer_branch
      %16 = sbr.rel target = $region3
    $region8: #{tpu_custom_call.1} parent=1 // loop_exit
      _
    %2883 = vsyncpa [#allocation6], 1
    %s2884 = scalar_lea.sflag [#allocation6], 1
    %2885 = vsyncpa %s2884, 1

</llo_original>
